<compile_context>
chip_gen: v7x
topology: tpu7x:2x2x1
jax: 0.10.0
libtpu: 0.0.40
codegen_flags: <defaults>
</compile_context>

<pallas_src>
import functools

import jax
import jax.numpy as jnp
from jax.experimental import pallas as pl
from jax.experimental.pallas import tpu as pltpu


# ============================================================================
# Fused dense stack: enc1->enc2->enc3 -> (mu|logvar) -> reparameterize ->
# dec->rec1->rec2->rec3, one pallas_call, weights VMEM resident in bf16.
# ============================================================================
def _fused_dense_kernel(flat_ref, eps_ref,
                        e1w, e1b, e2w, e2b, e3w, e3b,
                        mlw, mlb,
                        dw, db, r1w, r1b, r2w, r2b, r3w, r3b,
                        mu_ref, logvar_ref, dec_ref, *, latent):
    def dense(h, w_ref, b_ref, relu=True):
        # bf16 operands on the MXU, f32 accumulation, f32 bias/ReLU epilogue.
        y = jnp.dot(h.astype(jnp.bfloat16), w_ref[...],
                    preferred_element_type=jnp.float32)
        y = y + b_ref[...]
        if relu:
            y = jnp.maximum(y, 0.0)
        return y

    h = dense(flat_ref[...], e1w, e1b)
    h = dense(h, e2w, e2b)
    h = dense(h, e3w, e3b)
    ml = dense(h, mlw, mlb, relu=False)          # fused mu|logvar heads
    mu = ml[:, :latent]
    logvar = ml[:, latent:]
    # reparameterize: z = mu + eps * exp(0.5*logvar)  (f32, exp on the EUP)
    z = mu + eps_ref[...] * jnp.exp(0.5 * logvar)
    d = dense(z, dw, db)
    d = dense(d, r1w, r1b)
    d = dense(d, r2w, r2b)
    d = dense(d, r3w, r3b)                       # reference ReLUs rec3 too
    mu_ref[...] = mu
    logvar_ref[...] = logvar
    dec_ref[...] = d


def pallas_fused_dense(flat, eps, p):
    B = flat.shape[0]
    latent = p["mu_w"].shape[1]
    lin_in = p["rec3_w"].shape[1]

    ml_w = jnp.concatenate([p["mu_w"], p["logvar_w"]], axis=1)
    ml_b = jnp.concatenate([p["mu_b"], p["logvar_b"]], axis=0)

    layers = [(p["enc1_w"], p["enc1_b"]), (p["enc2_w"], p["enc2_b"]),
              (p["enc3_w"], p["enc3_b"]), (ml_w, ml_b),
              (p["dec_w"], p["dec_b"]), (p["rec1_w"], p["rec1_b"]),
              (p["rec2_w"], p["rec2_b"]), (p["rec3_w"], p["rec3_b"])]

    args = [flat.astype(jnp.bfloat16), eps.astype(jnp.float32)]
    for w, b in layers:
        args.append(w.astype(jnp.bfloat16))                  # bf16 MXU operands
        args.append(b.reshape(1, -1).astype(jnp.float32))    # f32 epilogue bias

    vmem = pl.BlockSpec(memory_space=pltpu.MemorySpace.VMEM)
    # Grid-less on purpose: at B=2 this segment is latency-bound; running it
    # on a single TensorCore is accepted (see TODO above for scaling up).
    return pl.pallas_call(
        functools.partial(_fused_dense_kernel, latent=latent),
        out_shape=(jax.ShapeDtypeStruct((B, latent), jnp.float32),
                   jax.ShapeDtypeStruct((B, latent), jnp.float32),
                   jax.ShapeDtypeStruct((B, lin_in), jnp.float32)),
        in_specs=[vmem] * len(args),
        out_specs=(vmem, vmem, vmem),
    )(*args)


# ============================================================================
# Conv3d(k=3, stride=2, pad=1) -- in-kernel im2col via phase decomposition,
# 27 VPU scalar-FMAs per output channel, bias+ReLU fused.  NCDHW layout.
# ============================================================================
def _conv3d_s2_kernel(x_ref, w_ref, b_ref, o_ref, *, Cin, Cout, Do, Ho, Wo, relu):
    # x_ref: (1, 8*Cin, Do+1, Ho+1, Wo+1) phase-split padded input (VMEM)
    # w_ref: (Cout*Cin*27,) f32 scalars in SMEM; b_ref: (Cout,) f32 in SMEM
    # o_ref: (1, Cout, Do, Ho, Wo)
    for co in range(Cout):
        acc = jnp.zeros((Do, Ho, Wo), jnp.float32)
        for dz in range(3):
            for dy in range(3):
                for dx in range(3):
                    ph = (dz % 2) * 4 + (dy % 2) * 2 + (dx % 2)
                    oz, oy, ox = dz // 2, dy // 2, dx // 2
                    for ci in range(Cin):
                        w = w_ref[(((co * Cin + ci) * 3 + dz) * 3 + dy) * 3 + dx]
                        acc = acc + x_ref[0, ph * Cin + ci,
                                          oz:oz + Do, oy:oy + Ho, ox:ox + Wo] * w
        acc = acc + b_ref[co]
        if relu:
            acc = jnp.maximum(acc, 0.0)
        o_ref[0, co] = acc


def conv3d_s2(x, w, b, *, relu):
    """Conv3d(kernel=3, stride=2, padding=1), x:(B,Cin,D,H,W), w:(Cout,Cin,3,3,3)."""
    B, Cin, D, H, W = x.shape
    Cout = w.shape[0]
    Do, Ho, Wo = (D - 1) // 2 + 1, (H - 1) // 2 + 1, (W - 1) // 2 + 1

    # Single-pass stride-2 phase split (space-to-depth): replaces the 27x
    # im2col patches tensor.  Padded so each dim is exactly 2*(o+1).
    xp = jnp.pad(x.astype(jnp.float32),
                 ((0, 0), (0, 0),
                  (1, 2 * Do + 1 - D), (1, 2 * Ho + 1 - H), (1, 2 * Wo + 1 - W)))
    xp = xp.reshape(B, Cin, Do + 1, 2, Ho + 1, 2, Wo + 1, 2)
    xp = jnp.transpose(xp, (0, 3, 5, 7, 1, 2, 4, 6))
    xp = xp.reshape(B, 8 * Cin, Do + 1, Ho + 1, Wo + 1)

    w_flat = w.reshape(-1).astype(jnp.float32)
    b_f = b.astype(jnp.float32)

    smem = pl.BlockSpec(memory_space=pltpu.MemorySpace.SMEM)
    return pl.pallas_call(
        functools.partial(_conv3d_s2_kernel, Cin=Cin, Cout=Cout,
                          Do=Do, Ho=Ho, Wo=Wo, relu=relu),
        out_shape=jax.ShapeDtypeStruct((B, Cout, Do, Ho, Wo), jnp.float32),
        grid=(B,),
        in_specs=[
            pl.BlockSpec((1, 8 * Cin, Do + 1, Ho + 1, Wo + 1),
                         lambda bidx: (bidx, 0, 0, 0, 0)),
            smem, smem,
        ],
        out_specs=pl.BlockSpec((1, Cout, Do, Ho, Wo),
                               lambda bidx: (bidx, 0, 0, 0, 0)),
        compiler_params=pltpu.CompilerParams(
            dimension_semantics=("parallel",)),
    )(xp, w_flat, b_f)


# ============================================================================
# ConvTranspose3d(k=3, stride=2, pad=1, output_padding in {0,1}) --
# output-stationary kernel over 8 output-parity phases, bias+ReLU fused.
# ============================================================================
_DECONV_DIM_TAPS = (((1, 0),), ((0, 1), (2, 0)))  # parity -> ((kernel_d, in_offset), ...)


def _deconv3d_s2_kernel(x_ref, w_ref, b_ref, o_ref, *, Cin, Cout,
                        Din, Hin, Win, relu):
    # x_ref: (1, Cin, Din+1, Hin+1, Win+1) right-padded input (VMEM)
    # w_ref: (Cin*Cout*27,) f32 in SMEM (torch (Cin,Cout,kz,ky,kx) order)
    # o_ref: (1, 8*Cout, Din, Hin, Win) -- 8 output-parity phase grids
    for pz in range(2):
        for py in range(2):
            for px in range(2):
                for co in range(Cout):
                    acc = jnp.zeros((Din, Hin, Win), jnp.float32)
                    for dz, oz in _DECONV_DIM_TAPS[pz]:
                        for dy, oy in _DECONV_DIM_TAPS[py]:
                            for dx, ox in _DECONV_DIM_TAPS[px]:
                                for ci in range(Cin):
                                    w = w_ref[(((ci * Cout + co) * 3 + dz) * 3
                                               + dy) * 3 + dx]
                                    acc = acc + x_ref[0, ci,
                                                      oz:oz + Din,
                                                      oy:oy + Hin,
                                                      ox:ox + Win] * w
                    acc = acc + b_ref[co]
                    if relu:
                        acc = jnp.maximum(acc, 0.0)
                    o_ref[0, (pz * 4 + py * 2 + px) * Cout + co] = acc


def conv_transpose3d_s2(x, w, b, *, output_padding, relu):
    """ConvTranspose3d(kernel=3, stride=2, padding=1), x:(B,Cin,D,H,W),
    w:(Cin,Cout,3,3,3) torch layout."""
    B, Cin, Din, Hin, Win = x.shape
    Cout = w.shape[1]
    op = output_padding
    assert 0 <= op < 2, "output_padding must be < stride"
    Qd, Qh, Qw = 2 * Din - 1 + op, 2 * Hin - 1 + op, 2 * Win - 1 + op

    xe = jnp.pad(x.astype(jnp.float32),
                 ((0, 0), (0, 0), (0, 1), (0, 1), (0, 1)))
    w_flat = w.reshape(-1).astype(jnp.float32)
    b_f = b.astype(jnp.float32)

    smem = pl.BlockSpec(memory_space=pltpu.MemorySpace.SMEM)
    out_ph = pl.pallas_call(
        functools.partial(_deconv3d_s2_kernel, Cin=Cin, Cout=Cout,
                          Din=Din, Hin=Hin, Win=Win, relu=relu),
        out_shape=jax.ShapeDtypeStruct((B, 8 * Cout, Din, Hin, Win), jnp.float32),
        grid=(B,),
        in_specs=[
            pl.BlockSpec((1, Cin, Din + 1, Hin + 1, Win + 1),
                         lambda bidx: (bidx, 0, 0, 0, 0)),
            smem, smem,
        ],
        out_specs=pl.BlockSpec((1, 8 * Cout, Din, Hin, Win),
                               lambda bidx: (bidx, 0, 0, 0, 0)),
        compiler_params=pltpu.CompilerParams(
            dimension_semantics=("parallel",)),
    )(xe, w_flat, b_f)

    # De-interleave the 8 parity phases into the dense output grid (one pass),
    # then crop to the torch ConvTranspose3d output extent.
    out_ph = out_ph.reshape(B, 2, 2, 2, Cout, Din, Hin, Win)
    full = jnp.transpose(out_ph, (0, 4, 5, 1, 6, 2, 7, 3))
    full = full.reshape(B, Cout, 2 * Din, 2 * Hin, 2 * Win)
    return full[:, :, :Qd, :Qh, :Qw]


# ============================================================================
# Convo3DVAE parameters + forward
# ============================================================================
def _conv_out(size, k, s, p):
    return (size - k + 2 * p) // s + 1


def init_params(key, input_dim, num_frames, hidden1, hidden2, hidden3, latent):
    middle_c, out_c, k = 2, 4, 3
    conv_h = _conv_out(_conv_out(input_dim, k, 2, 1), k, 2, 1)
    conv_d = _conv_out(_conv_out(num_frames, k, 2, 1), k, 2, 1)
    lin_in = conv_d * conv_h * conv_h * out_c

    keys = iter(jax.random.split(key, 40))

    def u(shape, fan_in):
        bound = 1.0 / jnp.sqrt(fan_in)
        return jax.random.uniform(next(keys), shape, jnp.float32, -bound, bound)

    p = {}
    p["conv1_w"] = u((middle_c, 1, k, k, k), 1 * k ** 3)
    p["conv1_b"] = u((middle_c,), 1 * k ** 3)
    p["conv2_w"] = u((out_c, middle_c, k, k, k), middle_c * k ** 3)
    p["conv2_b"] = u((out_c,), middle_c * k ** 3)
    # ConvTranspose3d init uses torch's fan_in = weight.shape[1] * k^3
    p["deconv1_w"] = u((out_c, middle_c, k, k, k), middle_c * k ** 3)
    p["deconv1_b"] = u((middle_c,), middle_c * k ** 3)
    p["deconv2_w"] = u((middle_c, 1, k, k, k), 1 * k ** 3)
    p["deconv2_b"] = u((1,), 1 * k ** 3)

    def lin(name, fin, fout):
        p[name + "_w"] = u((fin, fout), fin)
        p[name + "_b"] = u((fout,), fin)

    lin("enc1", lin_in, hidden1)
    lin("enc2", hidden1, hidden2)
    lin("enc3", hidden2, hidden3)
    lin("mu", hidden3, latent)
    lin("logvar", hidden3, latent)
    lin("dec", latent, hidden3)
    lin("rec1", hidden3, hidden2)
    lin("rec2", hidden2, hidden1)
    lin("rec3", hidden1, lin_in)

    meta = dict(out_channels=out_c, conv_depth=conv_d,
                conv_height=conv_h, conv_width=conv_h, lin_in=lin_in)
    return p, meta


def convo3d_vae_forward(p, meta, x, eps):
    B = x.shape[0]
    # Channels-first (torch NCDHW) everywhere: torch's view(B,-1) flatten and
    # the decoder's view() need no boundary transposes.
    h = conv3d_s2(x, p["conv1_w"], p["conv1_b"], relu=True)
    h = conv3d_s2(h, p["conv2_w"], p["conv2_b"], relu=True)
    flat = h.reshape(B, -1)
    mu, logvar, d = pallas_fused_dense(flat, eps, p)
    d = d.reshape(B, meta["out_channels"], meta["conv_depth"],
                  meta["conv_height"], meta["conv_width"])
    d = conv_transpose3d_s2(d, p["deconv1_w"], p["deconv1_b"],
                            output_padding=0, relu=True)
    x_rec = conv_transpose3d_s2(d, p["deconv2_w"], p["deconv2_b"],
                                output_padding=1, relu=False)
    return x_rec, mu, logvar


# ============================================================================
if __name__ == "__main__":
    batch = 2
    input_dimension = 16
    num_frames = 8
    hidden1, hidden2, hidden3, latent = 256, 192, 128, 64

    params, meta = init_params(jax.random.PRNGKey(42), input_dimension,
                               num_frames, hidden1, hidden2, hidden3, latent)

    key = jax.random.PRNGKey(0)
    kx, keps = jax.random.split(key)
    x = jax.random.normal(kx, (batch, 1, num_frames,
                               input_dimension, input_dimension), jnp.float32)
    eps = jax.random.normal(keps, (batch, latent), jnp.float32)

    # ---- self-check: conv / deconv Pallas kernels vs XLA references (f32) ----
    def conv_ref(xv, w, b, relu):
        y = jax.lax.conv_general_dilated(
            xv, w, window_strides=(2, 2, 2), padding=((1, 1),) * 3,
            dimension_numbers=("NCDHW", "OIDHW", "NCDHW"),
            precision=jax.lax.Precision.HIGHEST)
        y = y + b.reshape(1, -1, 1, 1, 1)
        return jnp.maximum(y, 0.0) if relu else y

    def deconv_ref(xv, w, b, op, relu):
        wf = jnp.transpose(jnp.flip(w, axis=(2, 3, 4)), (1, 0, 2, 3, 4))
        y = jax.lax.conv_general_dilated(
            xv, wf, window_strides=(1, 1, 1), padding=((1, 1 + op),) * 3,
            lhs_dilation=(2, 2, 2),
            dimension_numbers=("NCDHW", "OIDHW", "NCDHW"),
            precision=jax.lax.Precision.HIGHEST)
        y = y + b.reshape(1, -1, 1, 1, 1)
        return jnp.maximum(y, 0.0) if relu else y

    def _close(a, b_, tol=2e-4):
        return float(jnp.max(jnp.abs(a - b_))) < tol

    h1 = conv3d_s2(x, params["conv1_w"], params["conv1_b"], relu=True)
    assert _close(h1, conv_ref(x, params["conv1_w"], params["conv1_b"], True))
    h2 = conv3d_s2(h1, params["conv2_w"], params["conv2_b"], relu=True)
    assert _close(h2, conv_ref(h1, params["conv2_w"], params["conv2_b"], True))
    d1 = conv_transpose3d_s2(h2, params["deconv1_w"], params["deconv1_b"],
                             output_padding=0, relu=True)
    assert _close(d1, deconv_ref(h2, params["deconv1_w"],
                                 params["deconv1_b"], 0, True))
    d2 = conv_transpose3d_s2(d1, params["deconv2_w"], params["deconv2_b"],
                             output_padding=1, relu=False)
    assert _close(d2, deconv_ref(d1, params["deconv2_w"],
                                 params["deconv2_b"], 1, False))

    # ---- full forward ----
    fwd = jax.jit(functools.partial(convo3d_vae_forward, params, meta))
    x_rec, mu, logvar = fwd(x, eps)
    jax.block_until_ready((x_rec, mu, logvar))

    assert mu.shape == (batch, latent)
    assert logvar.shape == (batch, latent)
    assert x_rec.shape == (batch, 1,
                           4 * meta["conv_depth"] - 2,
                           4 * meta["conv_height"] - 2,
                           4 * meta["conv_width"] - 2)
    print("KERNEL_OK")
</pallas_src>

<mosaic_0001>
module attributes {stable_mosaic.version = 11 : i64} {
  func.func @_conv3d_s2_kernel(%arg0: i32, %arg1: memref<1x8x5x9x9xf32, #tpu.memory_space<vmem>>, %arg2: memref<54xf32, #tpu.memory_space<smem>>, %arg3: memref<2xf32, #tpu.memory_space<smem>>, %arg4: memref<1x2x4x8x8xf32, #tpu.memory_space<vmem>>) attributes {dimension_semantics = [#tpu.dimension_semantics<parallel>], iteration_bounds = array<i64: 2>, scalar_prefetch = 0 : i64, scratch_operands = 0 : i64, tpu.core_type = #tpu.core_type<tc>, window_params = [{transform_indices = @transform_0, window_bounds = array<i64: 1, 8, 5, 9, 9>}, {transform_indices = @transform_1, window_bounds = array<i64: 54>}, {transform_indices = @transform_2, window_bounds = array<i64: 2>}, {transform_indices = @transform_3, window_bounds = array<i64: 1, 2, 4, 8, 8>}]} {
    %cst = arith.constant 0.000000e+00 : f32
    %0 = vector.broadcast %cst : f32 to vector<4x8x8xf32>
    %c0 = arith.constant 0 : index
    %1 = memref.load %arg2[%c0] : memref<54xf32, #tpu.memory_space<smem>>
    %c0_0 = arith.constant 0 : index
    %c0_1 = arith.constant 0 : index
    %c0_2 = arith.constant 0 : index
    %c0_3 = arith.constant 0 : index
    %c0_4 = arith.constant 0 : index
    %2 = vector.load %arg1[%c0_0, %c0_1, %c0_2, %c0_3, %c0_4] : memref<1x8x5x9x9xf32, #tpu.memory_space<vmem>>, vector<1x1x4x8x8xf32>
    %3 = vector.shape_cast %2 : vector<1x1x4x8x8xf32> to vector<4x8x8xf32>
    %4 = vector.broadcast %1 : f32 to vector<4x8x8xf32>
    %5 = arith.mulf %3, %4 : vector<4x8x8xf32>
    %6 = arith.addf %0, %5 : vector<4x8x8xf32>
    %c1 = arith.constant 1 : index
    %7 = memref.load %arg2[%c1] : memref<54xf32, #tpu.memory_space<smem>>
    %c0_5 = arith.constant 0 : index
    %c1_6 = arith.constant 1 : index
    %c0_7 = arith.constant 0 : index
    %c0_8 = arith.constant 0 : index
    %c0_9 = arith.constant 0 : index
    %8 = vector.load %arg1[%c0_5, %c1_6, %c0_7, %c0_8, %c0_9] : memref<1x8x5x9x9xf32, #tpu.memory_space<vmem>>, vector<1x1x4x8x8xf32>
    %9 = vector.shape_cast %8 : vector<1x1x4x8x8xf32> to vector<4x8x8xf32>
    %10 = vector.broadcast %7 : f32 to vector<4x8x8xf32>
    %11 = arith.mulf %9, %10 : vector<4x8x8xf32>
    %12 = arith.addf %6, %11 : vector<4x8x8xf32>
    %c2 = arith.constant 2 : index
    %13 = memref.load %arg2[%c2] : memref<54xf32, #tpu.memory_space<smem>>
    %c0_10 = arith.constant 0 : index
    %c0_11 = arith.constant 0 : index
    %c0_12 = arith.constant 0 : index
    %c0_13 = arith.constant 0 : index
    %c1_14 = arith.constant 1 : index
    %14 = vector.load %arg1[%c0_10, %c0_11, %c0_12, %c0_13, %c1_14] : memref<1x8x5x9x9xf32, #tpu.memory_space<vmem>>, vector<1x1x4x8x8xf32>
    %15 = vector.shape_cast %14 : vector<1x1x4x8x8xf32> to vector<4x8x8xf32>
    %16 = vector.broadcast %13 : f32 to vector<4x8x8xf32>
    %17 = arith.mulf %15, %16 : vector<4x8x8xf32>
    %18 = arith.addf %12, %17 : vector<4x8x8xf32>
    %c3 = arith.constant 3 : index
    %19 = memref.load %arg2[%c3] : memref<54xf32, #tpu.memory_space<smem>>
    %c0_15 = arith.constant 0 : index
    %c2_16 = arith.constant 2 : index
    %c0_17 = arith.constant 0 : index
    %c0_18 = arith.constant 0 : index
    %c0_19 = arith.constant 0 : index
    %20 = vector.load %arg1[%c0_15, %c2_16, %c0_17, %c0_18, %c0_19] : memref<1x8x5x9x9xf32, #tpu.memory_space<vmem>>, vector<1x1x4x8x8xf32>
    %21 = vector.shape_cast %20 : vector<1x1x4x8x8xf32> to vector<4x8x8xf32>
    %22 = vector.broadcast %19 : f32 to vector<4x8x8xf32>
    %23 = arith.mulf %21, %22 : vector<4x8x8xf32>
    %24 = arith.addf %18, %23 : vector<4x8x8xf32>
    %c4 = arith.constant 4 : index
    %25 = memref.load %arg2[%c4] : memref<54xf32, #tpu.memory_space<smem>>
    %c0_20 = arith.constant 0 : index
    %c3_21 = arith.constant 3 : index
    %c0_22 = arith.constant 0 : index
    %c0_23 = arith.constant 0 : index
    %c0_24 = arith.constant 0 : index
    %26 = vector.load %arg1[%c0_20, %c3_21, %c0_22, %c0_23, %c0_24] : memref<1x8x5x9x9xf32, #tpu.memory_space<vmem>>, vector<1x1x4x8x8xf32>
    %27 = vector.shape_cast %26 : vector<1x1x4x8x8xf32> to vector<4x8x8xf32>
    %28 = vector.broadcast %25 : f32 to vector<4x8x8xf32>
    %29 = arith.mulf %27, %28 : vector<4x8x8xf32>
    %30 = arith.addf %24, %29 : vector<4x8x8xf32>
    %c5 = arith.constant 5 : index
    %31 = memref.load %arg2[%c5] : memref<54xf32, #tpu.memory_space<smem>>
    %c0_25 = arith.constant 0 : index
    %c2_26 = arith.constant 2 : index
    %c0_27 = arith.constant 0 : index
    %c0_28 = arith.constant 0 : index
    %c1_29 = arith.constant 1 : index
    %32 = vector.load %arg1[%c0_25, %c2_26, %c0_27, %c0_28, %c1_29] : memref<1x8x5x9x9xf32, #tpu.memory_space<vmem>>, vector<1x1x4x8x8xf32>
    %33 = vector.shape_cast %32 : vector<1x1x4x8x8xf32> to vector<4x8x8xf32>
    %34 = vector.broadcast %31 : f32 to vector<4x8x8xf32>
    %35 = arith.mulf %33, %34 : vector<4x8x8xf32>
    %36 = arith.addf %30, %35 : vector<4x8x8xf32>
    %c6 = arith.constant 6 : index
    %37 = memref.load %arg2[%c6] : memref<54xf32, #tpu.memory_space<smem>>
    %c0_30 = arith.constant 0 : index
    %c0_31 = arith.constant 0 : index
    %c0_32 = arith.constant 0 : index
    %c1_33 = arith.constant 1 : index
    %c0_34 = arith.constant 0 : index
    %38 = vector.load %arg1[%c0_30, %c0_31, %c0_32, %c1_33, %c0_34] : memref<1x8x5x9x9xf32, #tpu.memory_space<vmem>>, vector<1x1x4x8x8xf32>
    %39 = vector.shape_cast %38 : vector<1x1x4x8x8xf32> to vector<4x8x8xf32>
    %40 = vector.broadcast %37 : f32 to vector<4x8x8xf32>
    %41 = arith.mulf %39, %40 : vector<4x8x8xf32>
    %42 = arith.addf %36, %41 : vector<4x8x8xf32>
    %c7 = arith.constant 7 : index
    %43 = memref.load %arg2[%c7] : memref<54xf32, #tpu.memory_space<smem>>
    %c0_35 = arith.constant 0 : index
    %c1_36 = arith.constant 1 : index
    %c0_37 = arith.constant 0 : index
    %c1_38 = arith.constant 1 : index
    %c0_39 = arith.constant 0 : index
    %44 = vector.load %arg1[%c0_35, %c1_36, %c0_37, %c1_38, %c0_39] : memref<1x8x5x9x9xf32, #tpu.memory_space<vmem>>, vector<1x1x4x8x8xf32>
    %45 = vector.shape_cast %44 : vector<1x1x4x8x8xf32> to vector<4x8x8xf32>
    %46 = vector.broadcast %43 : f32 to vector<4x8x8xf32>
    %47 = arith.mulf %45, %46 : vector<4x8x8xf32>
    %48 = arith.addf %42, %47 : vector<4x8x8xf32>
    %c8 = arith.constant 8 : index
    %49 = memref.load %arg2[%c8] : memref<54xf32, #tpu.memory_space<smem>>
    %c0_40 = arith.constant 0 : index
    %c0_41 = arith.constant 0 : index
    %c0_42 = arith.constant 0 : index
    %c1_43 = arith.constant 1 : index
    %c1_44 = arith.constant 1 : index
    %50 = vector.load %arg1[%c0_40, %c0_41, %c0_42, %c1_43, %c1_44] : memref<1x8x5x9x9xf32, #tpu.memory_space<vmem>>, vector<1x1x4x8x8xf32>
    %51 = vector.shape_cast %50 : vector<1x1x4x8x8xf32> to vector<4x8x8xf32>
    %52 = vector.broadcast %49 : f32 to vector<4x8x8xf32>
    %53 = arith.mulf %51, %52 : vector<4x8x8xf32>
    %54 = arith.addf %48, %53 : vector<4x8x8xf32>
    %c9 = arith.constant 9 : index
    %55 = memref.load %arg2[%c9] : memref<54xf32, #tpu.memory_space<smem>>
    %c0_45 = arith.constant 0 : index
    %c4_46 = arith.constant 4 : index
    %c0_47 = arith.constant 0 : index
    %c0_48 = arith.constant 0 : index
    %c0_49 = arith.constant 0 : index
    %56 = vector.load %arg1[%c0_45, %c4_46, %c0_47, %c0_48, %c0_49] : memref<1x8x5x9x9xf32, #tpu.memory_space<vmem>>, vector<1x1x4x8x8xf32>
    %57 = vector.shape_cast %56 : vector<1x1x4x8x8xf32> to vector<4x8x8xf32>
    %58 = vector.broadcast %55 : f32 to vector<4x8x8xf32>
    %59 = arith.mulf %57, %58 : vector<4x8x8xf32>
    %60 = arith.addf %54, %59 : vector<4x8x8xf32>
    %c10 = arith.constant 10 : index
    %61 = memref.load %arg2[%c10] : memref<54xf32, #tpu.memory_space<smem>>
    %c0_50 = arith.constant 0 : index
    %c5_51 = arith.constant 5 : index
    %c0_52 = arith.constant 0 : index
    %c0_53 = arith.constant 0 : index
    %c0_54 = arith.constant 0 : index
    %62 = vector.load %arg1[%c0_50, %c5_51, %c0_52, %c0_53, %c0_54] : memref<1x8x5x9x9xf32, #tpu.memory_space<vmem>>, vector<1x1x4x8x8xf32>
    %63 = vector.shape_cast %62 : vector<1x1x4x8x8xf32> to vector<4x8x8xf32>
    %64 = vector.broadcast %61 : f32 to vector<4x8x8xf32>
    %65 = arith.mulf %63, %64 : vector<4x8x8xf32>
    %66 = arith.addf %60, %65 : vector<4x8x8xf32>
    %c11 = arith.constant 11 : index
    %67 = memref.load %arg2[%c11] : memref<54xf32, #tpu.memory_space<smem>>
    %c0_55 = arith.constant 0 : index
    %c4_56 = arith.constant 4 : index
    %c0_57 = arith.constant 0 : index
    %c0_58 = arith.constant 0 : index
    %c1_59 = arith.constant 1 : index
    %68 = vector.load %arg1[%c0_55, %c4_56, %c0_57, %c0_58, %c1_59] : memref<1x8x5x9x9xf32, #tpu.memory_space<vmem>>, vector<1x1x4x8x8xf32>
    %69 = vector.shape_cast %68 : vector<1x1x4x8x8xf32> to vector<4x8x8xf32>
    %70 = vector.broadcast %67 : f32 to vector<4x8x8xf32>
    %71 = arith.mulf %69, %70 : vector<4x8x8xf32>
    %72 = arith.addf %66, %71 : vector<4x8x8xf32>
    %c12 = arith.constant 12 : index
    %73 = memref.load %arg2[%c12] : memref<54xf32, #tpu.memory_space<smem>>
    %c0_60 = arith.constant 0 : index
    %c6_61 = arith.constant 6 : index
    %c0_62 = arith.constant 0 : index
    %c0_63 = arith.constant 0 : index
    %c0_64 = arith.constant 0 : index
    %74 = vector.load %arg1[%c0_60, %c6_61, %c0_62, %c0_63, %c0_64] : memref<1x8x5x9x9xf32, #tpu.memory_space<vmem>>, vector<1x1x4x8x8xf32>
    %75 = vector.shape_cast %74 : vector<1x1x4x8x8xf32> to vector<4x8x8xf32>
    %76 = vector.broadcast %73 : f32 to vector<4x8x8xf32>
    %77 = arith.mulf %75, %76 : vector<4x8x8xf32>
    %78 = arith.addf %72, %77 : vector<4x8x8xf32>
    %c13 = arith.constant 13 : index
    %79 = memref.load %arg2[%c13] : memref<54xf32, #tpu.memory_space<smem>>
    %c0_65 = arith.constant 0 : index
    %c7_66 = arith.constant 7 : index
    %c0_67 = arith.constant 0 : index
    %c0_68 = arith.constant 0 : index
    %c0_69 = arith.constant 0 : index
    %80 = vector.load %arg1[%c0_65, %c7_66, %c0_67, %c0_68, %c0_69] : memref<1x8x5x9x9xf32, #tpu.memory_space<vmem>>, vector<1x1x4x8x8xf32>
    %81 = vector.shape_cast %80 : vector<1x1x4x8x8xf32> to vector<4x8x8xf32>
    %82 = vector.broadcast %79 : f32 to vector<4x8x8xf32>
    %83 = arith.mulf %81, %82 : vector<4x8x8xf32>
    %84 = arith.addf %78, %83 : vector<4x8x8xf32>
    %c14 = arith.constant 14 : index
    %85 = memref.load %arg2[%c14] : memref<54xf32, #tpu.memory_space<smem>>
    %c0_70 = arith.constant 0 : index
    %c6_71 = arith.constant 6 : index
    %c0_72 = arith.constant 0 : index
    %c0_73 = arith.constant 0 : index
    %c1_74 = arith.constant 1 : index
    %86 = vector.load %arg1[%c0_70, %c6_71, %c0_72, %c0_73, %c1_74] : memref<1x8x5x9x9xf32, #tpu.memory_space<vmem>>, vector<1x1x4x8x8xf32>
    %87 = vector.shape_cast %86 : vector<1x1x4x8x8xf32> to vector<4x8x8xf32>
    %88 = vector.broadcast %85 : f32 to vector<4x8x8xf32>
    %89 = arith.mulf %87, %88 : vector<4x8x8xf32>
    %90 = arith.addf %84, %89 : vector<4x8x8xf32>
    %c15 = arith.constant 15 : index
    %91 = memref.load %arg2[%c15] : memref<54xf32, #tpu.memory_space<smem>>
    %c0_75 = arith.constant 0 : index
    %c4_76 = arith.constant 4 : index
    %c0_77 = arith.constant 0 : index
    %c1_78 = arith.constant 1 : index
    %c0_79 = arith.constant 0 : index
    %92 = vector.load %arg1[%c0_75, %c4_76, %c0_77, %c1_78, %c0_79] : memref<1x8x5x9x9xf32, #tpu.memory_space<vmem>>, vector<1x1x4x8x8xf32>
    %93 = vector.shape_cast %92 : vector<1x1x4x8x8xf32> to vector<4x8x8xf32>
    %94 = vector.broadcast %91 : f32 to vector<4x8x8xf32>
    %95 = arith.mulf %93, %94 : vector<4x8x8xf32>
    %96 = arith.addf %90, %95 : vector<4x8x8xf32>
    %c16 = arith.constant 16 : index
    %97 = memref.load %arg2[%c16] : memref<54xf32, #tpu.memory_space<smem>>
    %c0_80 = arith.constant 0 : index
    %c5_81 = arith.constant 5 : index
    %c0_82 = arith.constant 0 : index
    %c1_83 = arith.constant 1 : index
    %c0_84 = arith.constant 0 : index
    %98 = vector.load %arg1[%c0_80, %c5_81, %c0_82, %c1_83, %c0_84] : memref<1x8x5x9x9xf32, #tpu.memory_space<vmem>>, vector<1x1x4x8x8xf32>
    %99 = vector.shape_cast %98 : vector<1x1x4x8x8xf32> to vector<4x8x8xf32>
    %100 = vector.broadcast %97 : f32 to vector<4x8x8xf32>
    %101 = arith.mulf %99, %100 : vector<4x8x8xf32>
    %102 = arith.addf %96, %101 : vector<4x8x8xf32>
    %c17 = arith.constant 17 : index
    %103 = memref.load %arg2[%c17] : memref<54xf32, #tpu.memory_space<smem>>
    %c0_85 = arith.constant 0 : index
    %c4_86 = arith.constant 4 : index
    %c0_87 = arith.constant 0 : index
    %c1_88 = arith.constant 1 : index
    %c1_89 = arith.constant 1 : index
    %104 = vector.load %arg1[%c0_85, %c4_86, %c0_87, %c1_88, %c1_89] : memref<1x8x5x9x9xf32, #tpu.memory_space<vmem>>, vector<1x1x4x8x8xf32>
    %105 = vector.shape_cast %104 : vector<1x1x4x8x8xf32> to vector<4x8x8xf32>
    %106 = vector.broadcast %103 : f32 to vector<4x8x8xf32>
    %107 = arith.mulf %105, %106 : vector<4x8x8xf32>
    %108 = arith.addf %102, %107 : vector<4x8x8xf32>
    %c18 = arith.constant 18 : index
    %109 = memref.load %arg2[%c18] : memref<54xf32, #tpu.memory_space<smem>>
    %c0_90 = arith.constant 0 : index
    %c0_91 = arith.constant 0 : index
    %c1_92 = arith.constant 1 : index
    %c0_93 = arith.constant 0 : index
    %c0_94 = arith.constant 0 : index
    %110 = vector.load %arg1[%c0_90, %c0_91, %c1_92, %c0_93, %c0_94] : memref<1x8x5x9x9xf32, #tpu.memory_space<vmem>>, vector<1x1x4x8x8xf32>
    %111 = vector.shape_cast %110 : vector<1x1x4x8x8xf32> to vector<4x8x8xf32>
    %112 = vector.broadcast %109 : f32 to vector<4x8x8xf32>
    %113 = arith.mulf %111, %112 : vector<4x8x8xf32>
    %114 = arith.addf %108, %113 : vector<4x8x8xf32>
    %c19 = arith.constant 19 : index
    %115 = memref.load %arg2[%c19] : memref<54xf32, #tpu.memory_space<smem>>
    %c0_95 = arith.constant 0 : index
    %c1_96 = arith.constant 1 : index
    %c1_97 = arith.constant 1 : index
    %c0_98 = arith.constant 0 : index
    %c0_99 = arith.constant 0 : index
    %116 = vector.load %arg1[%c0_95, %c1_96, %c1_97, %c0_98, %c0_99] : memref<1x8x5x9x9xf32, #tpu.memory_space<vmem>>, vector<1x1x4x8x8xf32>
    %117 = vector.shape_cast %116 : vector<1x1x4x8x8xf32> to vector<4x8x8xf32>
    %118 = vector.broadcast %115 : f32 to vector<4x8x8xf32>
    %119 = arith.mulf %117, %118 : vector<4x8x8xf32>
    %120 = arith.addf %114, %119 : vector<4x8x8xf32>
    %c20 = arith.constant 20 : index
    %121 = memref.load %arg2[%c20] : memref<54xf32, #tpu.memory_space<smem>>
    %c0_100 = arith.constant 0 : index
    %c0_101 = arith.constant 0 : index
    %c1_102 = arith.constant 1 : index
    %c0_103 = arith.constant 0 : index
    %c1_104 = arith.constant 1 : index
    %122 = vector.load %arg1[%c0_100, %c0_101, %c1_102, %c0_103, %c1_104] : memref<1x8x5x9x9xf32, #tpu.memory_space<vmem>>, vector<1x1x4x8x8xf32>
    %123 = vector.shape_cast %122 : vector<1x1x4x8x8xf32> to vector<4x8x8xf32>
    %124 = vector.broadcast %121 : f32 to vector<4x8x8xf32>
    %125 = arith.mulf %123, %124 : vector<4x8x8xf32>
    %126 = arith.addf %120, %125 : vector<4x8x8xf32>
    %c21 = arith.constant 21 : index
    %127 = memref.load %arg2[%c21] : memref<54xf32, #tpu.memory_space<smem>>
    %c0_105 = arith.constant 0 : index
    %c2_106 = arith.constant 2 : index
    %c1_107 = arith.constant 1 : index
    %c0_108 = arith.constant 0 : index
    %c0_109 = arith.constant 0 : index
    %128 = vector.load %arg1[%c0_105, %c2_106, %c1_107, %c0_108, %c0_109] : memref<1x8x5x9x9xf32, #tpu.memory_space<vmem>>, vector<1x1x4x8x8xf32>
    %129 = vector.shape_cast %128 : vector<1x1x4x8x8xf32> to vector<4x8x8xf32>
    %130 = vector.broadcast %127 : f32 to vector<4x8x8xf32>
    %131 = arith.mulf %129, %130 : vector<4x8x8xf32>
    %132 = arith.addf %126, %131 : vector<4x8x8xf32>
    %c22 = arith.constant 22 : index
    %133 = memref.load %arg2[%c22] : memref<54xf32, #tpu.memory_space<smem>>
    %c0_110 = arith.constant 0 : index
    %c3_111 = arith.constant 3 : index
    %c1_112 = arith.constant 1 : index
    %c0_113 = arith.constant 0 : index
    %c0_114 = arith.constant 0 : index
    %134 = vector.load %arg1[%c0_110, %c3_111, %c1_112, %c0_113, %c0_114] : memref<1x8x5x9x9xf32, #tpu.memory_space<vmem>>, vector<1x1x4x8x8xf32>
    %135 = vector.shape_cast %134 : vector<1x1x4x8x8xf32> to vector<4x8x8xf32>
    %136 = vector.broadcast %133 : f32 to vector<4x8x8xf32>
    %137 = arith.mulf %135, %136 : vector<4x8x8xf32>
    %138 = arith.addf %132, %137 : vector<4x8x8xf32>
    %c23 = arith.constant 23 : index
    %139 = memref.load %arg2[%c23] : memref<54xf32, #tpu.memory_space<smem>>
    %c0_115 = arith.constant 0 : index
    %c2_116 = arith.constant 2 : index
    %c1_117 = arith.constant 1 : index
    %c0_118 = arith.constant 0 : index
    %c1_119 = arith.constant 1 : index
    %140 = vector.load %arg1[%c0_115, %c2_116, %c1_117, %c0_118, %c1_119] : memref<1x8x5x9x9xf32, #tpu.memory_space<vmem>>, vector<1x1x4x8x8xf32>
    %141 = vector.shape_cast %140 : vector<1x1x4x8x8xf32> to vector<4x8x8xf32>
    %142 = vector.broadcast %139 : f32 to vector<4x8x8xf32>
    %143 = arith.mulf %141, %142 : vector<4x8x8xf32>
    %144 = arith.addf %138, %143 : vector<4x8x8xf32>
    %c24 = arith.constant 24 : index
    %145 = memref.load %arg2[%c24] : memref<54xf32, #tpu.memory_space<smem>>
    %c0_120 = arith.constant 0 : index
    %c0_121 = arith.constant 0 : index
    %c1_122 = arith.constant 1 : index
    %c1_123 = arith.constant 1 : index
    %c0_124 = arith.constant 0 : index
    %146 = vector.load %arg1[%c0_120, %c0_121, %c1_122, %c1_123, %c0_124] : memref<1x8x5x9x9xf32, #tpu.memory_space<vmem>>, vector<1x1x4x8x8xf32>
    %147 = vector.shape_cast %146 : vector<1x1x4x8x8xf32> to vector<4x8x8xf32>
    %148 = vector.broadcast %145 : f32 to vector<4x8x8xf32>
    %149 = arith.mulf %147, %148 : vector<4x8x8xf32>
    %150 = arith.addf %144, %149 : vector<4x8x8xf32>
    %c25 = arith.constant 25 : index
    %151 = memref.load %arg2[%c25] : memref<54xf32, #tpu.memory_space<smem>>
    %c0_125 = arith.constant 0 : index
    %c1_126 = arith.constant 1 : index
    %c1_127 = arith.constant 1 : index
    %c1_128 = arith.constant 1 : index
    %c0_129 = arith.constant 0 : index
    %152 = vector.load %arg1[%c0_125, %c1_126, %c1_127, %c1_128, %c0_129] : memref<1x8x5x9x9xf32, #tpu.memory_space<vmem>>, vector<1x1x4x8x8xf32>
    %153 = vector.shape_cast %152 : vector<1x1x4x8x8xf32> to vector<4x8x8xf32>
    %154 = vector.broadcast %151 : f32 to vector<4x8x8xf32>
    %155 = arith.mulf %153, %154 : vector<4x8x8xf32>
    %156 = arith.addf %150, %155 : vector<4x8x8xf32>
    %c26 = arith.constant 26 : index
    %157 = memref.load %arg2[%c26] : memref<54xf32, #tpu.memory_space<smem>>
    %c0_130 = arith.constant 0 : index
    %c0_131 = arith.constant 0 : index
    %c1_132 = arith.constant 1 : index
    %c1_133 = arith.constant 1 : index
    %c1_134 = arith.constant 1 : index
    %158 = vector.load %arg1[%c0_130, %c0_131, %c1_132, %c1_133, %c1_134] : memref<1x8x5x9x9xf32, #tpu.memory_space<vmem>>, vector<1x1x4x8x8xf32>
    %159 = vector.shape_cast %158 : vector<1x1x4x8x8xf32> to vector<4x8x8xf32>
    %160 = vector.broadcast %157 : f32 to vector<4x8x8xf32>
    %161 = arith.mulf %159, %160 : vector<4x8x8xf32>
    %162 = arith.addf %156, %161 : vector<4x8x8xf32>
    %c0_135 = arith.constant 0 : index
    %163 = memref.load %arg3[%c0_135] : memref<2xf32, #tpu.memory_space<smem>>
    %164 = vector.broadcast %163 : f32 to vector<4x8x8xf32>
    %165 = arith.addf %162, %164 : vector<4x8x8xf32>
    %cst_136 = arith.constant 0.000000e+00 : f32
    %166 = vector.broadcast %cst_136 : f32 to vector<4x8x8xf32>
    %167 = arith.maximumf %165, %166 : vector<4x8x8xf32>
    %c0_137 = arith.constant 0 : index
    %c0_138 = arith.constant 0 : index
    %c0_139 = arith.constant 0 : index
    %c0_140 = arith.constant 0 : index
    %c0_141 = arith.constant 0 : index
    %168 = vector.load %arg4[%c0_137, %c0_138, %c0_139, %c0_140, %c0_141] : memref<1x2x4x8x8xf32, #tpu.memory_space<vmem>>, vector<1x1x4x8x8xf32>
    %169 = vector.shape_cast %168 : vector<1x1x4x8x8xf32> to vector<4x8x8xf32>
    %170 = vector.shape_cast %167 : vector<4x8x8xf32> to vector<1x1x4x8x8xf32>
    tpu.vector_store %arg4[%c0_137, %c0_138, %c0_139, %c0_140, %c0_141], %170 {strides = array<i32>} : memref<1x2x4x8x8xf32, #tpu.memory_space<vmem>>, vector<1x1x4x8x8xf32>,
    %cst_142 = arith.constant 0.000000e+00 : f32
    %171 = vector.broadcast %cst_142 : f32 to vector<4x8x8xf32>
    %c27 = arith.constant 27 : index
    %172 = memref.load %arg2[%c27] : memref<54xf32, #tpu.memory_space<smem>>
    %c0_143 = arith.constant 0 : index
    %c0_144 = arith.constant 0 : index
    %c0_145 = arith.constant 0 : index
    %c0_146 = arith.constant 0 : index
    %c0_147 = arith.constant 0 : index
    %173 = vector.load %arg1[%c0_143, %c0_144, %c0_145, %c0_146, %c0_147] : memref<1x8x5x9x9xf32, #tpu.memory_space<vmem>>, vector<1x1x4x8x8xf32>
    %174 = vector.shape_cast %173 : vector<1x1x4x8x8xf32> to vector<4x8x8xf32>
    %175 = vector.broadcast %172 : f32 to vector<4x8x8xf32>
    %176 = arith.mulf %174, %175 : vector<4x8x8xf32>
    %177 = arith.addf %171, %176 : vector<4x8x8xf32>
    %c28 = arith.constant 28 : index
    %178 = memref.load %arg2[%c28] : memref<54xf32, #tpu.memory_space<smem>>
    %c0_148 = arith.constant 0 : index
    %c1_149 = arith.constant 1 : index
    %c0_150 = arith.constant 0 : index
    %c0_151 = arith.constant 0 : index
    %c0_152 = arith.constant 0 : index
    %179 = vector.load %arg1[%c0_148, %c1_149, %c0_150, %c0_151, %c0_152] : memref<1x8x5x9x9xf32, #tpu.memory_space<vmem>>, vector<1x1x4x8x8xf32>
    %180 = vector.shape_cast %179 : vector<1x1x4x8x8xf32> to vector<4x8x8xf32>
    %181 = vector.broadcast %178 : f32 to vector<4x8x8xf32>
    %182 = arith.mulf %180, %181 : vector<4x8x8xf32>
    %183 = arith.addf %177, %182 : vector<4x8x8xf32>
    %c29 = arith.constant 29 : index
    %184 = memref.load %arg2[%c29] : memref<54xf32, #tpu.memory_space<smem>>
    %c0_153 = arith.constant 0 : index
    %c0_154 = arith.constant 0 : index
    %c0_155 = arith.constant 0 : index
    %c0_156 = arith.constant 0 : index
    %c1_157 = arith.constant 1 : index
    %185 = vector.load %arg1[%c0_153, %c0_154, %c0_155, %c0_156, %c1_157] : memref<1x8x5x9x9xf32, #tpu.memory_space<vmem>>, vector<1x1x4x8x8xf32>
    %186 = vector.shape_cast %185 : vector<1x1x4x8x8xf32> to vector<4x8x8xf32>
    %187 = vector.broadcast %184 : f32 to vector<4x8x8xf32>
    %188 = arith.mulf %186, %187 : vector<4x8x8xf32>
    %189 = arith.addf %183, %188 : vector<4x8x8xf32>
    %c30 = arith.constant 30 : index
    %190 = memref.load %arg2[%c30] : memref<54xf32, #tpu.memory_space<smem>>
    %c0_158 = arith.constant 0 : index
    %c2_159 = arith.constant 2 : index
    %c0_160 = arith.constant 0 : index
    %c0_161 = arith.constant 0 : index
    %c0_162 = arith.constant 0 : index
    %191 = vector.load %arg1[%c0_158, %c2_159, %c0_160, %c0_161, %c0_162] : memref<1x8x5x9x9xf32, #tpu.memory_space<vmem>>, vector<1x1x4x8x8xf32>
    %192 = vector.shape_cast %191 : vector<1x1x4x8x8xf32> to vector<4x8x8xf32>
    %193 = vector.broadcast %190 : f32 to vector<4x8x8xf32>
    %194 = arith.mulf %192, %193 : vector<4x8x8xf32>
    %195 = arith.addf %189, %194 : vector<4x8x8xf32>
    %c31 = arith.constant 31 : index
    %196 = memref.load %arg2[%c31] : memref<54xf32, #tpu.memory_space<smem>>
    %c0_163 = arith.constant 0 : index
    %c3_164 = arith.constant 3 : index
    %c0_165 = arith.constant 0 : index
    %c0_166 = arith.constant 0 : index
    %c0_167 = arith.constant 0 : index
    %197 = vector.load %arg1[%c0_163, %c3_164, %c0_165, %c0_166, %c0_167] : memref<1x8x5x9x9xf32, #tpu.memory_space<vmem>>, vector<1x1x4x8x8xf32>
    %198 = vector.shape_cast %197 : vector<1x1x4x8x8xf32> to vector<4x8x8xf32>
    %199 = vector.broadcast %196 : f32 to vector<4x8x8xf32>
    %200 = arith.mulf %198, %199 : vector<4x8x8xf32>
    %201 = arith.addf %195, %200 : vector<4x8x8xf32>
    %c32 = arith.constant 32 : index
    %202 = memref.load %arg2[%c32] : memref<54xf32, #tpu.memory_space<smem>>
    %c0_168 = arith.constant 0 : index
    %c2_169 = arith.constant 2 : index
    %c0_170 = arith.constant 0 : index
    %c0_171 = arith.constant 0 : index
    %c1_172 = arith.constant 1 : index
    %203 = vector.load %arg1[%c0_168, %c2_169, %c0_170, %c0_171, %c1_172] : memref<1x8x5x9x9xf32, #tpu.memory_space<vmem>>, vector<1x1x4x8x8xf32>
    %204 = vector.shape_cast %203 : vector<1x1x4x8x8xf32> to vector<4x8x8xf32>
    %205 = vector.broadcast %202 : f32 to vector<4x8x8xf32>
    %206 = arith.mulf %204, %205 : vector<4x8x8xf32>
    %207 = arith.addf %201, %206 : vector<4x8x8xf32>
    %c33 = arith.constant 33 : index
    %208 = memref.load %arg2[%c33] : memref<54xf32, #tpu.memory_space<smem>>
    %c0_173 = arith.constant 0 : index
    %c0_174 = arith.constant 0 : index
    %c0_175 = arith.constant 0 : index
    %c1_176 = arith.constant 1 : index
    %c0_177 = arith.constant 0 : index
    %209 = vector.load %arg1[%c0_173, %c0_174, %c0_175, %c1_176, %c0_177] : memref<1x8x5x9x9xf32, #tpu.memory_space<vmem>>, vector<1x1x4x8x8xf32>
    %210 = vector.shape_cast %209 : vector<1x1x4x8x8xf32> to vector<4x8x8xf32>
    %211 = vector.broadcast %208 : f32 to vector<4x8x8xf32>
    %212 = arith.mulf %210, %211 : vector<4x8x8xf32>
    %213 = arith.addf %207, %212 : vector<4x8x8xf32>
    %c34 = arith.constant 34 : index
    %214 = memref.load %arg2[%c34] : memref<54xf32, #tpu.memory_space<smem>>
    %c0_178 = arith.constant 0 : index
    %c1_179 = arith.constant 1 : index
    %c0_180 = arith.constant 0 : index
    %c1_181 = arith.constant 1 : index
    %c0_182 = arith.constant 0 : index
    %215 = vector.load %arg1[%c0_178, %c1_179, %c0_180, %c1_181, %c0_182] : memref<1x8x5x9x9xf32, #tpu.memory_space<vmem>>, vector<1x1x4x8x8xf32>
    %216 = vector.shape_cast %215 : vector<1x1x4x8x8xf32> to vector<4x8x8xf32>
    %217 = vector.broadcast %214 : f32 to vector<4x8x8xf32>
    %218 = arith.mulf %216, %217 : vector<4x8x8xf32>
    %219 = arith.addf %213, %218 : vector<4x8x8xf32>
    %c35 = arith.constant 35 : index
    %220 = memref.load %arg2[%c35] : memref<54xf32, #tpu.memory_space<smem>>
    %c0_183 = arith.constant 0 : index
    %c0_184 = arith.constant 0 : index
    %c0_185 = arith.constant 0 : index
    %c1_186 = arith.constant 1 : index
    %c1_187 = arith.constant 1 : index
    %221 = vector.load %arg1[%c0_183, %c0_184, %c0_185, %c1_186, %c1_187] : memref<1x8x5x9x9xf32, #tpu.memory_space<vmem>>, vector<1x1x4x8x8xf32>
    %222 = vector.shape_cast %221 : vector<1x1x4x8x8xf32> to vector<4x8x8xf32>
    %223 = vector.broadcast %220 : f32 to vector<4x8x8xf32>
    %224 = arith.mulf %222, %223 : vector<4x8x8xf32>
    %225 = arith.addf %219, %224 : vector<4x8x8xf32>
    %c36 = arith.constant 36 : index
    %226 = memref.load %arg2[%c36] : memref<54xf32, #tpu.memory_space<smem>>
    %c0_188 = arith.constant 0 : index
    %c4_189 = arith.constant 4 : index
    %c0_190 = arith.constant 0 : index
    %c0_191 = arith.constant 0 : index
    %c0_192 = arith.constant 0 : index
    %227 = vector.load %arg1[%c0_188, %c4_189, %c0_190, %c0_191, %c0_192] : memref<1x8x5x9x9xf32, #tpu.memory_space<vmem>>, vector<1x1x4x8x8xf32>
    %228 = vector.shape_cast %227 : vector<1x1x4x8x8xf32> to vector<4x8x8xf32>
    %229 = vector.broadcast %226 : f32 to vector<4x8x8xf32>
    %230 = arith.mulf %228, %229 : vector<4x8x8xf32>
    %231 = arith.addf %225, %230 : vector<4x8x8xf32>
    %c37 = arith.constant 37 : index
    %232 = memref.load %arg2[%c37] : memref<54xf32, #tpu.memory_space<smem>>
    %c0_193 = arith.constant 0 : index
    %c5_194 = arith.constant 5 : index
    %c0_195 = arith.constant 0 : index
    %c0_196 = arith.constant 0 : index
    %c0_197 = arith.constant 0 : index
    %233 = vector.load %arg1[%c0_193, %c5_194, %c0_195, %c0_196, %c0_197] : memref<1x8x5x9x9xf32, #tpu.memory_space<vmem>>, vector<1x1x4x8x8xf32>
    %234 = vector.shape_cast %233 : vector<1x1x4x8x8xf32> to vector<4x8x8xf32>
    %235 = vector.broadcast %232 : f32 to vector<4x8x8xf32>
    %236 = arith.mulf %234, %235 : vector<4x8x8xf32>
    %237 = arith.addf %231, %236 : vector<4x8x8xf32>
    %c38 = arith.constant 38 : index
    %238 = memref.load %arg2[%c38] : memref<54xf32, #tpu.memory_space<smem>>
    %c0_198 = arith.constant 0 : index
    %c4_199 = arith.constant 4 : index
    %c0_200 = arith.constant 0 : index
    %c0_201 = arith.constant 0 : index
    %c1_202 = arith.constant 1 : index
    %239 = vector.load %arg1[%c0_198, %c4_199, %c0_200, %c0_201, %c1_202] : memref<1x8x5x9x9xf32, #tpu.memory_space<vmem>>, vector<1x1x4x8x8xf32>
    %240 = vector.shape_cast %239 : vector<1x1x4x8x8xf32> to vector<4x8x8xf32>
    %241 = vector.broadcast %238 : f32 to vector<4x8x8xf32>
    %242 = arith.mulf %240, %241 : vector<4x8x8xf32>
    %243 = arith.addf %237, %242 : vector<4x8x8xf32>
    %c39 = arith.constant 39 : index
    %244 = memref.load %arg2[%c39] : memref<54xf32, #tpu.memory_space<smem>>
    %c0_203 = arith.constant 0 : index
    %c6_204 = arith.constant 6 : index
    %c0_205 = arith.constant 0 : index
    %c0_206 = arith.constant 0 : index
    %c0_207 = arith.constant 0 : index
    %245 = vector.load %arg1[%c0_203, %c6_204, %c0_205, %c0_206, %c0_207] : memref<1x8x5x9x9xf32, #tpu.memory_space<vmem>>, vector<1x1x4x8x8xf32>
    %246 = vector.shape_cast %245 : vector<1x1x4x8x8xf32> to vector<4x8x8xf32>
    %247 = vector.broadcast %244 : f32 to vector<4x8x8xf32>
    %248 = arith.mulf %246, %247 : vector<4x8x8xf32>
    %249 = arith.addf %243, %248 : vector<4x8x8xf32>
    %c40 = arith.constant 40 : index
    %250 = memref.load %arg2[%c40] : memref<54xf32, #tpu.memory_space<smem>>
    %c0_208 = arith.constant 0 : index
    %c7_209 = arith.constant 7 : index
    %c0_210 = arith.constant 0 : index
    %c0_211 = arith.constant 0 : index
    %c0_212 = arith.constant 0 : index
    %251 = vector.load %arg1[%c0_208, %c7_209, %c0_210, %c0_211, %c0_212] : memref<1x8x5x9x9xf32, #tpu.memory_space<vmem>>, vector<1x1x4x8x8xf32>
    %252 = vector.shape_cast %251 : vector<1x1x4x8x8xf32> to vector<4x8x8xf32>
    %253 = vector.broadcast %250 : f32 to vector<4x8x8xf32>
    %254 = arith.mulf %252, %253 : vector<4x8x8xf32>
    %255 = arith.addf %249, %254 : vector<4x8x8xf32>
    %c41 = arith.constant 41 : index
    %256 = memref.load %arg2[%c41] : memref<54xf32, #tpu.memory_space<smem>>
    %c0_213 = arith.constant 0 : index
    %c6_214 = arith.constant 6 : index
    %c0_215 = arith.constant 0 : index
    %c0_216 = arith.constant 0 : index
    %c1_217 = arith.constant 1 : index
    %257 = vector.load %arg1[%c0_213, %c6_214, %c0_215, %c0_216, %c1_217] : memref<1x8x5x9x9xf32, #tpu.memory_space<vmem>>, vector<1x1x4x8x8xf32>
    %258 = vector.shape_cast %257 : vector<1x1x4x8x8xf32> to vector<4x8x8xf32>
    %259 = vector.broadcast %256 : f32 to vector<4x8x8xf32>
    %260 = arith.mulf %258, %259 : vector<4x8x8xf32>
    %261 = arith.addf %255, %260 : vector<4x8x8xf32>
    %c42 = arith.constant 42 : index
    %262 = memref.load %arg2[%c42] : memref<54xf32, #tpu.memory_space<smem>>
    %c0_218 = arith.constant 0 : index
    %c4_219 = arith.constant 4 : index
    %c0_220 = arith.constant 0 : index
    %c1_221 = arith.constant 1 : index
    %c0_222 = arith.constant 0 : index
    %263 = vector.load %arg1[%c0_218, %c4_219, %c0_220, %c1_221, %c0_222] : memref<1x8x5x9x9xf32, #tpu.memory_space<vmem>>, vector<1x1x4x8x8xf32>
    %264 = vector.shape_cast %263 : vector<1x1x4x8x8xf32> to vector<4x8x8xf32>
    %265 = vector.broadcast %262 : f32 to vector<4x8x8xf32>
    %266 = arith.mulf %264, %265 : vector<4x8x8xf32>
    %267 = arith.addf %261, %266 : vector<4x8x8xf32>
    %c43 = arith.constant 43 : index
    %268 = memref.load %arg2[%c43] : memref<54xf32, #tpu.memory_space<smem>>
    %c0_223 = arith.constant 0 : index
    %c5_224 = arith.constant 5 : index
    %c0_225 = arith.constant 0 : index
    %c1_226 = arith.constant 1 : index
    %c0_227 = arith.constant 0 : index
    %269 = vector.load %arg1[%c0_223, %c5_224, %c0_225, %c1_226, %c0_227] : memref<1x8x5x9x9xf32, #tpu.memory_space<vmem>>, vector<1x1x4x8x8xf32>
    %270 = vector.shape_cast %269 : vector<1x1x4x8x8xf32> to vector<4x8x8xf32>
    %271 = vector.broadcast %268 : f32 to vector<4x8x8xf32>
    %272 = arith.mulf %270, %271 : vector<4x8x8xf32>
    %273 = arith.addf %267, %272 : vector<4x8x8xf32>
    %c44 = arith.constant 44 : index
    %274 = memref.load %arg2[%c44] : memref<54xf32, #tpu.memory_space<smem>>
    %c0_228 = arith.constant 0 : index
    %c4_229 = arith.constant 4 : index
    %c0_230 = arith.constant 0 : index
    %c1_231 = arith.constant 1 : index
    %c1_232 = arith.constant 1 : index
    %275 = vector.load %arg1[%c0_228, %c4_229, %c0_230, %c1_231, %c1_232] : memref<1x8x5x9x9xf32, #tpu.memory_space<vmem>>, vector<1x1x4x8x8xf32>
    %276 = vector.shape_cast %275 : vector<1x1x4x8x8xf32> to vector<4x8x8xf32>
    %277 = vector.broadcast %274 : f32 to vector<4x8x8xf32>
    %278 = arith.mulf %276, %277 : vector<4x8x8xf32>
    %279 = arith.addf %273, %278 : vector<4x8x8xf32>
    %c45 = arith.constant 45 : index
    %280 = memref.load %arg2[%c45] : memref<54xf32, #tpu.memory_space<smem>>
    %c0_233 = arith.constant 0 : index
    %c0_234 = arith.constant 0 : index
    %c1_235 = arith.constant 1 : index
    %c0_236 = arith.constant 0 : index
    %c0_237 = arith.constant 0 : index
    %281 = vector.load %arg1[%c0_233, %c0_234, %c1_235, %c0_236, %c0_237] : memref<1x8x5x9x9xf32, #tpu.memory_space<vmem>>, vector<1x1x4x8x8xf32>
    %282 = vector.shape_cast %281 : vector<1x1x4x8x8xf32> to vector<4x8x8xf32>
    %283 = vector.broadcast %280 : f32 to vector<4x8x8xf32>
    %284 = arith.mulf %282, %283 : vector<4x8x8xf32>
    %285 = arith.addf %279, %284 : vector<4x8x8xf32>
    %c46 = arith.constant 46 : index
    %286 = memref.load %arg2[%c46] : memref<54xf32, #tpu.memory_space<smem>>
    %c0_238 = arith.constant 0 : index
    %c1_239 = arith.constant 1 : index
    %c1_240 = arith.constant 1 : index
    %c0_241 = arith.constant 0 : index
    %c0_242 = arith.constant 0 : index
    %287 = vector.load %arg1[%c0_238, %c1_239, %c1_240, %c0_241, %c0_242] : memref<1x8x5x9x9xf32, #tpu.memory_space<vmem>>, vector<1x1x4x8x8xf32>
    %288 = vector.shape_cast %287 : vector<1x1x4x8x8xf32> to vector<4x8x8xf32>
    %289 = vector.broadcast %286 : f32 to vector<4x8x8xf32>
    %290 = arith.mulf %288, %289 : vector<4x8x8xf32>
    %291 = arith.addf %285, %290 : vector<4x8x8xf32>
    %c47 = arith.constant 47 : index
    %292 = memref.load %arg2[%c47] : memref<54xf32, #tpu.memory_space<smem>>
    %c0_243 = arith.constant 0 : index
    %c0_244 = arith.constant 0 : index
    %c1_245 = arith.constant 1 : index
    %c0_246 = arith.constant 0 : index
    %c1_247 = arith.constant 1 : index
    %293 = vector.load %arg1[%c0_243, %c0_244, %c1_245, %c0_246, %c1_247] : memref<1x8x5x9x9xf32, #tpu.memory_space<vmem>>, vector<1x1x4x8x8xf32>
    %294 = vector.shape_cast %293 : vector<1x1x4x8x8xf32> to vector<4x8x8xf32>
    %295 = vector.broadcast %292 : f32 to vector<4x8x8xf32>
    %296 = arith.mulf %294, %295 : vector<4x8x8xf32>
    %297 = arith.addf %291, %296 : vector<4x8x8xf32>
    %c48 = arith.constant 48 : index
    %298 = memref.load %arg2[%c48] : memref<54xf32, #tpu.memory_space<smem>>
    %c0_248 = arith.constant 0 : index
    %c2_249 = arith.constant 2 : index
    %c1_250 = arith.constant 1 : index
    %c0_251 = arith.constant 0 : index
    %c0_252 = arith.constant 0 : index
    %299 = vector.load %arg1[%c0_248, %c2_249, %c1_250, %c0_251, %c0_252] : memref<1x8x5x9x9xf32, #tpu.memory_space<vmem>>, vector<1x1x4x8x8xf32>
    %300 = vector.shape_cast %299 : vector<1x1x4x8x8xf32> to vector<4x8x8xf32>
    %301 = vector.broadcast %298 : f32 to vector<4x8x8xf32>
    %302 = arith.mulf %300, %301 : vector<4x8x8xf32>
    %303 = arith.addf %297, %302 : vector<4x8x8xf32>
    %c49 = arith.constant 49 : index
    %304 = memref.load %arg2[%c49] : memref<54xf32, #tpu.memory_space<smem>>
    %c0_253 = arith.constant 0 : index
    %c3_254 = arith.constant 3 : index
    %c1_255 = arith.constant 1 : index
    %c0_256 = arith.constant 0 : index
    %c0_257 = arith.constant 0 : index
    %305 = vector.load %arg1[%c0_253, %c3_254, %c1_255, %c0_256, %c0_257] : memref<1x8x5x9x9xf32, #tpu.memory_space<vmem>>, vector<1x1x4x8x8xf32>
    %306 = vector.shape_cast %305 : vector<1x1x4x8x8xf32> to vector<4x8x8xf32>
    %307 = vector.broadcast %304 : f32 to vector<4x8x8xf32>
    %308 = arith.mulf %306, %307 : vector<4x8x8xf32>
    %309 = arith.addf %303, %308 : vector<4x8x8xf32>
    %c50 = arith.constant 50 : index
    %310 = memref.load %arg2[%c50] : memref<54xf32, #tpu.memory_space<smem>>
    %c0_258 = arith.constant 0 : index
    %c2_259 = arith.constant 2 : index
    %c1_260 = arith.constant 1 : index
    %c0_261 = arith.constant 0 : index
    %c1_262 = arith.constant 1 : index
    %311 = vector.load %arg1[%c0_258, %c2_259, %c1_260, %c0_261, %c1_262] : memref<1x8x5x9x9xf32, #tpu.memory_space<vmem>>, vector<1x1x4x8x8xf32>
    %312 = vector.shape_cast %311 : vector<1x1x4x8x8xf32> to vector<4x8x8xf32>
    %313 = vector.broadcast %310 : f32 to vector<4x8x8xf32>
    %314 = arith.mulf %312, %313 : vector<4x8x8xf32>
    %315 = arith.addf %309, %314 : vector<4x8x8xf32>
    %c51 = arith.constant 51 : index
    %316 = memref.load %arg2[%c51] : memref<54xf32, #tpu.memory_space<smem>>
    %c0_263 = arith.constant 0 : index
    %c0_264 = arith.constant 0 : index
    %c1_265 = arith.constant 1 : index
    %c1_266 = arith.constant 1 : index
    %c0_267 = arith.constant 0 : index
    %317 = vector.load %arg1[%c0_263, %c0_264, %c1_265, %c1_266, %c0_267] : memref<1x8x5x9x9xf32, #tpu.memory_space<vmem>>, vector<1x1x4x8x8xf32>
    %318 = vector.shape_cast %317 : vector<1x1x4x8x8xf32> to vector<4x8x8xf32>
    %319 = vector.broadcast %316 : f32 to vector<4x8x8xf32>
    %320 = arith.mulf %318, %319 : vector<4x8x8xf32>
    %321 = arith.addf %315, %320 : vector<4x8x8xf32>
    %c52 = arith.constant 52 : index
    %322 = memref.load %arg2[%c52] : memref<54xf32, #tpu.memory_space<smem>>
    %c0_268 = arith.constant 0 : index
    %c1_269 = arith.constant 1 : index
    %c1_270 = arith.constant 1 : index
    %c1_271 = arith.constant 1 : index
    %c0_272 = arith.constant 0 : index
    %323 = vector.load %arg1[%c0_268, %c1_269, %c1_270, %c1_271, %c0_272] : memref<1x8x5x9x9xf32, #tpu.memory_space<vmem>>, vector<1x1x4x8x8xf32>
    %324 = vector.shape_cast %323 : vector<1x1x4x8x8xf32> to vector<4x8x8xf32>
    %325 = vector.broadcast %322 : f32 to vector<4x8x8xf32>
    %326 = arith.mulf %324, %325 : vector<4x8x8xf32>
    %327 = arith.addf %321, %326 : vector<4x8x8xf32>
    %c53 = arith.constant 53 : index
    %328 = memref.load %arg2[%c53] : memref<54xf32, #tpu.memory_space<smem>>
    %c0_273 = arith.constant 0 : index
    %c0_274 = arith.constant 0 : index
    %c1_275 = arith.constant 1 : index
    %c1_276 = arith.constant 1 : index
    %c1_277 = arith.constant 1 : index
    %329 = vector.load %arg1[%c0_273, %c0_274, %c1_275, %c1_276, %c1_277] : memref<1x8x5x9x9xf32, #tpu.memory_space<vmem>>, vector<1x1x4x8x8xf32>
    %330 = vector.shape_cast %329 : vector<1x1x4x8x8xf32> to vector<4x8x8xf32>
    %331 = vector.broadcast %328 : f32 to vector<4x8x8xf32>
    %332 = arith.mulf %330, %331 : vector<4x8x8xf32>
    %333 = arith.addf %327, %332 : vector<4x8x8xf32>
    %c1_278 = arith.constant 1 : index
    %334 = memref.load %arg3[%c1_278] : memref<2xf32, #tpu.memory_space<smem>>
    %335 = vector.broadcast %334 : f32 to vector<4x8x8xf32>
    %336 = arith.addf %333, %335 : vector<4x8x8xf32>
    %cst_279 = arith.constant 0.000000e+00 : f32
    %337 = vector.broadcast %cst_279 : f32 to vector<4x8x8xf32>
    %338 = arith.maximumf %336, %337 : vector<4x8x8xf32>
    %c0_280 = arith.constant 0 : index
    %c1_281 = arith.constant 1 : index
    %c0_282 = arith.constant 0 : index
    %c0_283 = arith.constant 0 : index
    %c0_284 = arith.constant 0 : index
    %339 = vector.load %arg4[%c0_280, %c1_281, %c0_282, %c0_283, %c0_284] : memref<1x2x4x8x8xf32, #tpu.memory_space<vmem>>, vector<1x1x4x8x8xf32>
    %340 = vector.shape_cast %339 : vector<1x1x4x8x8xf32> to vector<4x8x8xf32>
    %341 = vector.shape_cast %338 : vector<4x8x8xf32> to vector<1x1x4x8x8xf32>
    tpu.vector_store %arg4[%c0_280, %c1_281, %c0_282, %c0_283, %c0_284], %341 {strides = array<i32>} : memref<1x2x4x8x8xf32, #tpu.memory_space<vmem>>, vector<1x1x4x8x8xf32>,
    return
  }
  func.func @transform_0(%arg0: i32) -> (i32, i32, i32, i32, i32) {
    %c0_i32 = arith.constant 0 : i32
    %c0_i32_0 = arith.constant 0 : i32
    %c0_i32_1 = arith.constant 0 : i32
    %c0_i32_2 = arith.constant 0 : i32
    %c0_i32_3 = arith.constant 0 : i32
    return %arg0, %c0_i32, %c0_i32_0, %c0_i32_1, %c0_i32_2 : i32, i32, i32, i32, i32
  }
  func.func @transform_1(%arg0: i32) -> i32 {
    %c0_i32 = arith.constant 0 : i32
    %c0_i32_0 = arith.constant 0 : i32
    return %c0_i32 : i32
  }
  func.func @transform_2(%arg0: i32) -> i32 {
    %c0_i32 = arith.constant 0 : i32
    %c0_i32_0 = arith.constant 0 : i32
    return %c0_i32 : i32
  }
  func.func @transform_3(%arg0: i32) -> (i32, i32, i32, i32, i32) {
    %c0_i32 = arith.constant 0 : i32
    %c0_i32_0 = arith.constant 0 : i32
    %c0_i32_1 = arith.constant 0 : i32
    %c0_i32_2 = arith.constant 0 : i32
    %c0_i32_3 = arith.constant 0 : i32
    return %arg0, %c0_i32, %c0_i32_0, %c0_i32_1, %c0_i32_2 : i32, i32, i32, i32, i32
  }
}

</mosaic_0001>

<llo_original>
// kernel: tpu_custom_call.1
$region0: #{tpu_custom_call.1}
  #allocation0 [shape = 'u32[]', space=smem, size = 0x4, offset = 0x4, fixed_abs, tag = 'smem constant byte address 0x4 - core index']
  #allocation1 [shape = 'u32[144,128]{1,0:T(1,128)}', space=vmem, size = 0x12000, scoped, tag = 'internal scratch']
  %s0 = inlined_call_operand.vmem [shape: f32[2,8,5,9,9], index: 0, kind: input, shape index: {}]
  %s1 = inlined_call_operand.vmem [shape: f32[54], index: 1, kind: input, shape index: {}]
  %s2 = inlined_call_operand.vmem [shape: f32[2], index: 2, kind: input, shape index: {}]
  %s3 = inlined_call_operand.hbm [shape: f32[2,2,4,8,8], index: 3, kind: output, shape index: {}]
  %s4 = sld [smem:[#allocation0]]
  $region53: #{tpu_custom_call.1} parent=0
    _
  %s6 = ssub.s32 1, %s4
  %s7 = scalar_select 0, %s6, %s4
  $region1: #{tpu_custom_call.1} parent=0
    #allocation2 [shape = 'u8[512]{0}', space=smem, size = 0x200, scoped, tag = 'input window, operand 1, single buffered']
    #allocation3 [shape = 's32[2]{0}', space=sflag, size = 0x8, scoped, tag = 'scoped memory for tpu_custom_call.1']
    #allocation4 [shape = 's32[2]{0}', space=sflag, size = 0x8, scoped, tag = 'scoped memory for tpu_custom_call.1']
    #allocation5 [shape = 'u8[512]{0}', space=smem, size = 0x200, scoped, tag = 'input window, operand 2, single buffered']
    #allocation6 [shape = 's32[1]{0}', space=sflag, size = 0x4, scoped, tag = 'scoped memory for tpu_custom_call.1']
    #allocation7 [shape = 'u8[65536]{0}', space=vmem, size = 0x10000, scoped, tag = 'output window, operand 0']
    %8 = vsyncpa [#allocation4], 0
    %9 = vsyncpa [#allocation6], 0
    %10 = vsyncpa [#allocation3], 0
    %s11 = scalar_lea.sflag [#allocation3], 1
    %12 = vsyncpa %s11, 0
    loop: start=0, step=1, limit=4
    $region2: #{tpu_custom_call.1} parent=1 // loop_pre_header
      _
    $region3: #{tpu_custom_call.1} parent=1 // loop_header
      %s14 = sphi 0, %s18
      %p15 = scmp.ge.s32.totalorder %s14, 4
      %s24 = sphi 0, %s26
      %s27 = sphi 0, %s24
      %s28 = sphi 0, %s27
      %s44 = sphi 0, %s28
      %s48 = sphi 0, %s48
      %s50 = sphi 0, %s48
      %s51 = sphi 0, %s50
      %s65 = sphi 0, %s51
      %s69 = sphi 0, %s69
      %s71 = sphi 0, %s69
      %s72 = sphi 0, %s71
      %s86 = sphi 0, %s72
      %s92 = sphi 0, %s94
      %s95 = sphi 0, %s92
      %s96 = sphi 0, %s95
      %s112 = sphi 0, %s96
    $region4: #{tpu_custom_call.1} parent=1 // loop_header_branch
      %17 = sbr.rel (%p15) target = $region8
    $region5: #{tpu_custom_call.1} parent=1 // loop_body
      %s19 = ssub.s32 %s14, 1
      %s20 = ssub.s32 %s14, 2
      %s21 = sadd.s32 %s14, 1
      %s22 = ssub.s32 %s14, %s21
      %p23 = scmp.eq.s32.totalorder %s22, 0
      %s25 = sadd.s32 %s24, 1
      %s26 = scalar_select %p23, %s24, %s25
      %p29 = pneg %p23
      %p30 = scmp.eq.s32.totalorder %s14, 1
      %p31 = por %p29, %p30
      %p32 = scmp.ne.s32.totalorder %s24, %s27
      %p33 = scmp.eq.s32.totalorder %s14, 0
      %p34 = por %p32, %p33
      %p35 = scmp.ne.s32.totalorder %s24, %s27
      %p36 = scmp.eq.s32.totalorder %s19, 1
      %p37 = por %p35, %p36
      %p38 = scmp.ne.s32.totalorder %s27, %s28
      %p39 = scmp.eq.s32.totalorder %s19, 0
      %p40 = por %p38, %p39
      %p41 = scmp.ne.s32.totalorder %s27, %s28
      %p42 = scmp.eq.s32.totalorder %s20, 1
      %p43 = por %p41, %p42
      %p45 = scmp.ne.s32.totalorder %s28, %s44
      %p46 = scmp.eq.s32.totalorder %s20, 0
      %p47 = por %p45, %p46
      %s49 = sadd.s32 %s48, 1
      %p52 = scmp.eq.s32.totalorder %s14, 1
      %p53 = scmp.ne.s32.totalorder %s48, %s50
      %p54 = scmp.eq.s32.totalorder %s14, 0
      %p55 = por %p53, %p54
      %p56 = scmp.ne.s32.totalorder %s48, %s50
      %p57 = scmp.eq.s32.totalorder %s19, 1
      %p58 = por %p56, %p57
      %p59 = scmp.ne.s32.totalorder %s50, %s51
      %p60 = scmp.eq.s32.totalorder %s19, 0
      %p61 = por %p59, %p60
      %p62 = scmp.ne.s32.totalorder %s50, %s51
      %p63 = scmp.eq.s32.totalorder %s20, 1
      %p64 = por %p62, %p63
      %p66 = scmp.ne.s32.totalorder %s51, %s65
      %p67 = scmp.eq.s32.totalorder %s20, 0
      %p68 = por %p66, %p67
      %s70 = sadd.s32 %s69, 1
      %p73 = scmp.eq.s32.totalorder %s14, 1
      %p74 = scmp.ne.s32.totalorder %s69, %s71
      %p75 = scmp.eq.s32.totalorder %s14, 0
      %p76 = por %p74, %p75
      %p77 = scmp.ne.s32.totalorder %s69, %s71
      %p78 = scmp.eq.s32.totalorder %s19, 1
      %p79 = por %p77, %p78
      %p80 = scmp.ne.s32.totalorder %s71, %s72
      %p81 = scmp.eq.s32.totalorder %s19, 0
      %p82 = por %p80, %p81
      %p83 = scmp.ne.s32.totalorder %s71, %s72
      %p84 = scmp.eq.s32.totalorder %s20, 1
      %p85 = por %p83, %p84
      %p87 = scmp.ne.s32.totalorder %s72, %s86
      %p88 = scmp.eq.s32.totalorder %s20, 0
      %p89 = por %p87, %p88
      %s90 = ssub.s32 %s14, %s21
      %p91 = scmp.eq.s32.totalorder %s90, 0
      %s93 = sadd.s32 %s92, 1
      %s94 = scalar_select %p91, %s92, %s93
      %p97 = pneg %p91
      %p98 = scmp.eq.s32.totalorder %s14, 1
      %p99 = por %p97, %p98
      %p100 = scmp.ne.s32.totalorder %s92, %s95
      %p101 = scmp.eq.s32.totalorder %s14, 0
      %p102 = por %p100, %p101
      %p103 = scmp.ne.s32.totalorder %s92, %s95
      %p104 = scmp.eq.s32.totalorder %s19, 1
      %p105 = por %p103, %p104
      %p106 = scmp.ne.s32.totalorder %s95, %s96
      %p107 = scmp.eq.s32.totalorder %s19, 0
      %p108 = por %p106, %p107
      %p109 = scmp.ne.s32.totalorder %s95, %s96
      %p110 = scmp.eq.s32.totalorder %s20, 1
      %p111 = por %p109, %p110
      %p113 = scmp.ne.s32.totalorder %s96, %s112
      %p114 = scmp.eq.s32.totalorder %s20, 0
      %p115 = por %p113, %p114
      %p116 = scmp.le.s32.totalorder 1, %s14
      %p117 = scmp.lt.s32.totalorder %s14, 3
      %p118 = pnand %p116, %p117
      %p119 = pneg %p118
      // Predicated region
      $region9: #{tpu_custom_call.1} parent=5 // pred_check
        _
      $region10: #{tpu_custom_call.1} parent=5 // pred_check_branch
        %121 = sbr.rel (%p118) target = $region12
      $region11: #{tpu_custom_call.1} parent=5 // pred_region
        %s122 = ssub.s32 %s14, 1
        // Predicated region
        $region13: #{tpu_custom_call.1} parent=11 // pred_check
          %p123 = pneg %p61
        $region14: #{tpu_custom_call.1} parent=11 // pred_check_branch
          %125 = sbr.rel (%p123) target = $region16
        $region15: #{tpu_custom_call.1} parent=11 // pred_region
          %s127 = ssub.s32 16, 16
          %128 = vsyncadd [#allocation4], %s127
          %s130 = sshll.u32 %s1, 4
          %s131 = int_to_ptr.vmem [resolvable:$true] %s130
          %133 = dma.vmem_to_smem %s131, 16, [#allocation2], [#allocation4]
        $region16: #{tpu_custom_call.1} parent=11 // pred_fallthru
          _
        // Predicated region
        $region17: #{tpu_custom_call.1} parent=11 // pred_check
          %p134 = pneg %p82
        $region18: #{tpu_custom_call.1} parent=11 // pred_check_branch
          %136 = sbr.rel (%p134) target = $region20
        $region19: #{tpu_custom_call.1} parent=11 // pred_region
          %s138 = ssub.s32 16, 16
          %139 = vsyncadd [#allocation6], %s138
          %s141 = sshll.u32 %s2, 4
          %s142 = int_to_ptr.vmem [resolvable:$true] %s141
          %144 = dma.vmem_to_smem %s142, 16, [#allocation5], [#allocation6]
        $region20: #{tpu_custom_call.1} parent=11 // pred_fallthru
          _
      $region12: #{tpu_custom_call.1} parent=5 // pred_fallthru
        _
      %p145 = scmp.lt.s32.totalorder %s14, 2
      // Predicated region
      $region21: #{tpu_custom_call.1} parent=5 // pred_check
        %p146 = pneg %p145
      $region22: #{tpu_custom_call.1} parent=5 // pred_check_branch
        %148 = sbr.rel (%p146) target = $region24
      $region23: #{tpu_custom_call.1} parent=5 // pred_region
        // Predicated region
        $region25: #{tpu_custom_call.1} parent=23 // pred_check
          %p149 = pneg %p34
        $region26: #{tpu_custom_call.1} parent=23 // pred_check_branch
          %151 = sbr.rel (%p149) target = $region28
        $region27: #{tpu_custom_call.1} parent=23 // pred_region
          %p152 = scmp.lt.s32.totalorder %s14, 1
          %s153 = scalar_select %p152, %s14, 1
          %s154 = smul.addr %s153, 80
          %s155 = smul.addr %s154, 8
          %s156 = scalar_lea.vmem %s0, %s155
        $region28: #{tpu_custom_call.1} parent=23 // pred_fallthru
          _
      $region24: #{tpu_custom_call.1} parent=5 // pred_fallthru
        _
      %p157 = scmp.le.s32.totalorder 1, %s14
      %p158 = scmp.lt.s32.totalorder %s14, 3
      %p159 = pnand %p157, %p158
      %p160 = pneg %p159
      // Predicated region
      $region29: #{tpu_custom_call.1} parent=5 // pred_check
        _
      $region30: #{tpu_custom_call.1} parent=5 // pred_check_branch
        %162 = sbr.rel (%p159) target = $region32
      $region31: #{tpu_custom_call.1} parent=5 // pred_region
        %s163 = ssub.s32 %s14, 1
        // Predicated region
        $region33: #{tpu_custom_call.1} parent=31 // pred_check
          %p164 = pneg %p61
        $region34: #{tpu_custom_call.1} parent=31 // pred_check_branch
          %166 = sbr.rel (%p164) target = $region36
        $region35: #{tpu_custom_call.1} parent=31 // pred_region
          %167 = dma.done [#allocation4], 16
        $region36: #{tpu_custom_call.1} parent=31 // pred_fallthru
          _
        // Predicated region
        $region37: #{tpu_custom_call.1} parent=31 // pred_check
          %p168 = pneg %p82
        $region38: #{tpu_custom_call.1} parent=31 // pred_check_branch
          %170 = sbr.rel (%p168) target = $region40
        $region39: #{tpu_custom_call.1} parent=31 // pred_region
          %171 = dma.done [#allocation6], 16
        $region40: #{tpu_custom_call.1} parent=31 // pred_fallthru
          _
        %172 = sfence
        %p173 = scmp.lt.s32.totalorder %s19, 1
        %s174 = scalar_select %p173, %s19, 1
        %s175 = smul.addr %s174, 80
        %s176 = smul.addr %s175, 8
        %s177 = scalar_lea.vmem %s0, %s176
        %p178 = pneg %p40
        %p179 = pneg %p37
        %p180 = pneg %p61
        %p181 = pneg %p58
        %p182 = pneg %p82
        %p183 = pneg %p79
        %p184 = pneg %p108
        %p185 = pneg %p105
        %s186 = sand.u32 %s95, 1
        %s187 = scalar_lea.sflag [#allocation3], %s186
        %s188 = sand.u32 %s95, 1
        %s189 = smul.addr %s188, 64
        %s190 = scalar_lea.vmem [#allocation7], %s189
        %p191 = scmp.lt.s32.totalorder %s19, 1
        %s192 = scalar_select %p191, %s19, 1
        %s193 = smul.addr %s192, 80
        %s194 = smul.addr %s193, 8
        %s195 = scalar_lea.vmem %s0, %s194
        %s196 = sld [smem:[#allocation2]]
        %v197 = vld [vmem:[%s195] sm:$0xff]
        %v198 = vld [vmem:[%s195 + $0x10] sm:$0xff]
        %v199 = vld [vmem:[%s195 + $0x20] sm:$0xff]
        %v200 = vld [vmem:[%s195 + $0x30] sm:$0xff]
        %v201 = vstv %s196
        %v202 = vmul.f32 %v197, %v201
        %v203 = vmul.f32 %v198, %v201
        %v204 = vmul.f32 %v199, %v201
        %v205 = vmul.f32 %v200, %v201
        %v206 = vadd.f32 %v202, 0.0
        %v207 = vadd.f32 %v203, 0.0
        %v208 = vadd.f32 %v204, 0.0
        %v209 = vadd.f32 %v205, 0.0
        %s210 = sld [smem:[#allocation2 + $0x1]]
        %s211 = scalar_lea.vmem %s195, 80
        %v212 = vld [vmem:[%s211] sm:$0xff]
        %v213 = vld [vmem:[%s211 + $0x10] sm:$0xff]
        %v214 = vld [vmem:[%s211 + $0x20] sm:$0xff]
        %v215 = vld [vmem:[%s211 + $0x30] sm:$0xff]
        %v216 = vstv %s210
        %v217 = vmul.f32 %v212, %v216
        %v218 = vmul.f32 %v213, %v216
        %v219 = vmul.f32 %v214, %v216
        %v220 = vmul.f32 %v215, %v216
        %v221 = vadd.f32 %v206, %v217
        %v222 = vadd.f32 %v207, %v218
        %v223 = vadd.f32 %v208, %v219
        %v224 = vadd.f32 %v209, %v220
        %s225 = sld [smem:[#allocation2 + $0x2]]
        %v226 = vstv %s225
        %v227 = vmul.f32 %v197, %v226
        %v228 = vmul.f32 %v198, %v226
        %v229 = vmul.f32 %v199, %v226
        %v230 = vmul.f32 %v200, %v226
        %235 = vrot.lane.b32.xlu0 %v227, 127
        %v236 = vpop.permute.xlu0 %235
        %237 = vrot.lane.b32.xlu0 %v228, 127
        %v238 = vpop.permute.xlu0 %237
        %239 = vrot.lane.b32.xlu0 %v229, 127
        %v240 = vpop.permute.xlu0 %239
        %241 = vrot.lane.b32.xlu0 %v230, 127
        %v242 = vpop.permute.xlu0 %241
        %v247 = vadd.f32 %v221, %v236
        %v248 = vadd.f32 %v222, %v238
        %v249 = vadd.f32 %v223, %v240
        %v250 = vadd.f32 %v224, %v242
        %s251 = sld [smem:[#allocation2 + $0x3]]
        %s252 = scalar_lea.vmem %s195, 160
        %v253 = vld [vmem:[%s252] sm:$0xff]
        %v254 = vld [vmem:[%s252 + $0x10] sm:$0xff]
        %v255 = vld [vmem:[%s252 + $0x20] sm:$0xff]
        %v256 = vld [vmem:[%s252 + $0x30] sm:$0xff]
        %v257 = vstv %s251
        %v258 = vmul.f32 %v253, %v257
        %v259 = vmul.f32 %v254, %v257
        %v260 = vmul.f32 %v255, %v257
        %v261 = vmul.f32 %v256, %v257
        %v262 = vadd.f32 %v247, %v258
        %v263 = vadd.f32 %v248, %v259
        %v264 = vadd.f32 %v249, %v260
        %v265 = vadd.f32 %v250, %v261
        %s266 = sld [smem:[#allocation2 + $0x4]]
        %s267 = scalar_lea.vmem %s195, 240
        %v268 = vld [vmem:[%s267] sm:$0xff]
        %v269 = vld [vmem:[%s267 + $0x10] sm:$0xff]
        %v270 = vld [vmem:[%s267 + $0x20] sm:$0xff]
        %v271 = vld [vmem:[%s267 + $0x30] sm:$0xff]
        %v272 = vstv %s266
        %v273 = vmul.f32 %v268, %v272
        %v274 = vmul.f32 %v269, %v272
        %v275 = vmul.f32 %v270, %v272
        %v276 = vmul.f32 %v271, %v272
        %v277 = vadd.f32 %v262, %v273
        %v278 = vadd.f32 %v263, %v274
        %v279 = vadd.f32 %v264, %v275
        %v280 = vadd.f32 %v265, %v276
        %s281 = sld [smem:[#allocation2 + $0x5]]
        %v282 = vstv %s281
        %v283 = vmul.f32 %v253, %v282
        %v284 = vmul.f32 %v254, %v282
        %v285 = vmul.f32 %v255, %v282
        %v286 = vmul.f32 %v256, %v282
        %291 = vrot.lane.b32.xlu0 %v283, 127
        %v292 = vpop.permute.xlu0 %291
        %293 = vrot.lane.b32.xlu0 %v284, 127
        %v294 = vpop.permute.xlu0 %293
        %295 = vrot.lane.b32.xlu0 %v285, 127
        %v296 = vpop.permute.xlu0 %295
        %297 = vrot.lane.b32.xlu0 %v286, 127
        %v298 = vpop.permute.xlu0 %297
        %v303 = vadd.f32 %v277, %v292
        %v304 = vadd.f32 %v278, %v294
        %v305 = vadd.f32 %v279, %v296
        %v306 = vadd.f32 %v280, %v298
        %s307 = sld [smem:[#allocation2 + $0x6]]
        %v308 = vld [vmem:[%s195 + $0x1] sm:$0xff]
        %v309 = vld [vmem:[%s195 + $0x11] sm:$0xff]
        %v310 = vld [vmem:[%s195 + $0x21] sm:$0xff]
        %v311 = vld [vmem:[%s195 + $0x31] sm:$0xff]
        %v312 = vstv %s307
        %v313 = vmul.f32 %v308, %v312
        %v314 = vmul.f32 %v309, %v312
        %v315 = vmul.f32 %v310, %v312
        %v316 = vmul.f32 %v311, %v312
        %v317 = vadd.f32 %v303, %v313
        %v318 = vadd.f32 %v304, %v314
        %v319 = vadd.f32 %v305, %v315
        %v320 = vadd.f32 %v306, %v316
        %s321 = sld [smem:[#allocation2 + $0x7]]
        %v322 = vld [vmem:[%s211 + $0x1] sm:$0xff]
        %v323 = vld [vmem:[%s211 + $0x11] sm:$0xff]
        %v324 = vld [vmem:[%s211 + $0x21] sm:$0xff]
        %v325 = vld [vmem:[%s211 + $0x31] sm:$0xff]
        %v326 = vstv %s321
        %v327 = vmul.f32 %v322, %v326
        %v328 = vmul.f32 %v323, %v326
        %v329 = vmul.f32 %v324, %v326
        %v330 = vmul.f32 %v325, %v326
        %v331 = vadd.f32 %v317, %v327
        %v332 = vadd.f32 %v318, %v328
        %v333 = vadd.f32 %v319, %v329
        %v334 = vadd.f32 %v320, %v330
        %s335 = sld [smem:[#allocation2 + $0x8]]
        %v336 = vstv %s335
        %v337 = vmul.f32 %v308, %v336
        %v338 = vmul.f32 %v309, %v336
        %v339 = vmul.f32 %v310, %v336
        %v340 = vmul.f32 %v311, %v336
        %345 = vrot.lane.b32.xlu0 %v337, 127
        %v346 = vpop.permute.xlu0 %345
        %347 = vrot.lane.b32.xlu0 %v338, 127
        %v348 = vpop.permute.xlu0 %347
        %349 = vrot.lane.b32.xlu0 %v339, 127
        %v350 = vpop.permute.xlu0 %349
        %351 = vrot.lane.b32.xlu0 %v340, 127
        %v352 = vpop.permute.xlu0 %351
        %v357 = vadd.f32 %v331, %v346
        %v358 = vadd.f32 %v332, %v348
        %v359 = vadd.f32 %v333, %v350
        %v360 = vadd.f32 %v334, %v352
        %s361 = sld [smem:[#allocation2 + $0x9]]
        %s362 = scalar_lea.vmem %s195, 320
        %v363 = vld [vmem:[%s362] sm:$0xff]
        %v364 = vld [vmem:[%s362 + $0x10] sm:$0xff]
        %v365 = vld [vmem:[%s362 + $0x20] sm:$0xff]
        %v366 = vld [vmem:[%s362 + $0x30] sm:$0xff]
        %v367 = vstv %s361
        %v368 = vmul.f32 %v363, %v367
        %v369 = vmul.f32 %v364, %v367
        %v370 = vmul.f32 %v365, %v367
        %v371 = vmul.f32 %v366, %v367
        %v372 = vadd.f32 %v357, %v368
        %v373 = vadd.f32 %v358, %v369
        %v374 = vadd.f32 %v359, %v370
        %v375 = vadd.f32 %v360, %v371
        %s376 = sld [smem:[#allocation2 + $0xa]]
        %s377 = scalar_lea.vmem %s195, 400
        %v378 = vld [vmem:[%s377] sm:$0xff]
        %v379 = vld [vmem:[%s377 + $0x10] sm:$0xff]
        %v380 = vld [vmem:[%s377 + $0x20] sm:$0xff]
        %v381 = vld [vmem:[%s377 + $0x30] sm:$0xff]
        %v382 = vstv %s376
        %v383 = vmul.f32 %v378, %v382
        %v384 = vmul.f32 %v379, %v382
        %v385 = vmul.f32 %v380, %v382
        %v386 = vmul.f32 %v381, %v382
        %v387 = vadd.f32 %v372, %v383
        %v388 = vadd.f32 %v373, %v384
        %v389 = vadd.f32 %v374, %v385
        %v390 = vadd.f32 %v375, %v386
        %s391 = sld [smem:[#allocation2 + $0xb]]
        %v392 = vstv %s391
        %v393 = vmul.f32 %v363, %v392
        %v394 = vmul.f32 %v364, %v392
        %v395 = vmul.f32 %v365, %v392
        %v396 = vmul.f32 %v366, %v392
        %401 = vrot.lane.b32.xlu0 %v393, 127
        %v402 = vpop.permute.xlu0 %401
        %403 = vrot.lane.b32.xlu0 %v394, 127
        %v404 = vpop.permute.xlu0 %403
        %405 = vrot.lane.b32.xlu0 %v395, 127
        %v406 = vpop.permute.xlu0 %405
        %407 = vrot.lane.b32.xlu0 %v396, 127
        %v408 = vpop.permute.xlu0 %407
        %v413 = vadd.f32 %v387, %v402
        %v414 = vadd.f32 %v388, %v404
        %v415 = vadd.f32 %v389, %v406
        %v416 = vadd.f32 %v390, %v408
        %s417 = sld [smem:[#allocation2 + $0xc]]
        %s418 = scalar_lea.vmem %s195, 480
        %v419 = vld [vmem:[%s418] sm:$0xff]
        %v420 = vld [vmem:[%s418 + $0x10] sm:$0xff]
        %v421 = vld [vmem:[%s418 + $0x20] sm:$0xff]
        %v422 = vld [vmem:[%s418 + $0x30] sm:$0xff]
        %v423 = vstv %s417
        %v424 = vmul.f32 %v419, %v423
        %v425 = vmul.f32 %v420, %v423
        %v426 = vmul.f32 %v421, %v423
        %v427 = vmul.f32 %v422, %v423
        %v428 = vadd.f32 %v413, %v424
        %v429 = vadd.f32 %v414, %v425
        %v430 = vadd.f32 %v415, %v426
        %v431 = vadd.f32 %v416, %v427
        %s432 = sld [smem:[#allocation2 + $0xd]]
        %s433 = scalar_lea.vmem %s195, 560
        %v434 = vld [vmem:[%s433] sm:$0xff]
        %v435 = vld [vmem:[%s433 + $0x10] sm:$0xff]
        %v436 = vld [vmem:[%s433 + $0x20] sm:$0xff]
        %v437 = vld [vmem:[%s433 + $0x30] sm:$0xff]
        %v438 = vstv %s432
        %v439 = vmul.f32 %v434, %v438
        %v440 = vmul.f32 %v435, %v438
        %v441 = vmul.f32 %v436, %v438
        %v442 = vmul.f32 %v437, %v438
        %v443 = vadd.f32 %v428, %v439
        %v444 = vadd.f32 %v429, %v440
        %v445 = vadd.f32 %v430, %v441
        %v446 = vadd.f32 %v431, %v442
        %s447 = sld [smem:[#allocation2 + $0xe]]
        %v448 = vstv %s447
        %v449 = vmul.f32 %v419, %v448
        %v450 = vmul.f32 %v420, %v448
        %v451 = vmul.f32 %v421, %v448
        %v452 = vmul.f32 %v422, %v448
        %457 = vrot.lane.b32.xlu0 %v449, 127
        %v458 = vpop.permute.xlu0 %457
        %459 = vrot.lane.b32.xlu0 %v450, 127
        %v460 = vpop.permute.xlu0 %459
        %461 = vrot.lane.b32.xlu0 %v451, 127
        %v462 = vpop.permute.xlu0 %461
        %463 = vrot.lane.b32.xlu0 %v452, 127
        %v464 = vpop.permute.xlu0 %463
        %v469 = vadd.f32 %v443, %v458
        %v470 = vadd.f32 %v444, %v460
        %v471 = vadd.f32 %v445, %v462
        %v472 = vadd.f32 %v446, %v464
        %s473 = sld [smem:[#allocation2 + $0xf]]
        %v474 = vld [vmem:[%s362 + $0x1] sm:$0xff]
        %v475 = vld [vmem:[%s362 + $0x11] sm:$0xff]
        %v476 = vld [vmem:[%s362 + $0x21] sm:$0xff]
        %v477 = vld [vmem:[%s362 + $0x31] sm:$0xff]
        %v478 = vstv %s473
        %v479 = vmul.f32 %v474, %v478
        %v480 = vmul.f32 %v475, %v478
        %v481 = vmul.f32 %v476, %v478
        %v482 = vmul.f32 %v477, %v478
        %v483 = vadd.f32 %v469, %v479
        %v484 = vadd.f32 %v470, %v480
        %v485 = vadd.f32 %v471, %v481
        %v486 = vadd.f32 %v472, %v482
        %s487 = sld [smem:[#allocation2 + $0x10]]
        %v488 = vld [vmem:[%s377 + $0x1] sm:$0xff]
        %v489 = vld [vmem:[%s377 + $0x11] sm:$0xff]
        %v490 = vld [vmem:[%s377 + $0x21] sm:$0xff]
        %v491 = vld [vmem:[%s377 + $0x31] sm:$0xff]
        %v492 = vstv %s487
        %v493 = vmul.f32 %v488, %v492
        %v494 = vmul.f32 %v489, %v492
        %v495 = vmul.f32 %v490, %v492
        %v496 = vmul.f32 %v491, %v492
        %v497 = vadd.f32 %v483, %v493
        %v498 = vadd.f32 %v484, %v494
        %v499 = vadd.f32 %v485, %v495
        %v500 = vadd.f32 %v486, %v496
        %s501 = sld [smem:[#allocation2 + $0x11]]
        %v502 = vstv %s501
        %v503 = vmul.f32 %v474, %v502
        %v504 = vmul.f32 %v475, %v502
        %v505 = vmul.f32 %v476, %v502
        %v506 = vmul.f32 %v477, %v502
        %511 = vrot.lane.b32.xlu0 %v503, 127
        %v512 = vpop.permute.xlu0 %511
        %513 = vrot.lane.b32.xlu0 %v504, 127
        %v514 = vpop.permute.xlu0 %513
        %515 = vrot.lane.b32.xlu0 %v505, 127
        %v516 = vpop.permute.xlu0 %515
        %517 = vrot.lane.b32.xlu0 %v506, 127
        %v518 = vpop.permute.xlu0 %517
        %v523 = vadd.f32 %v497, %v512
        %v524 = vadd.f32 %v498, %v514
        %v525 = vadd.f32 %v499, %v516
        %v526 = vadd.f32 %v500, %v518
        %s527 = sld [smem:[#allocation2 + $0x12]]
        %s528 = scalar_lea.vmem %s195, 16
        %v529 = vld [vmem:[%s528] sm:$0xff]
        %v530 = vld [vmem:[%s528 + $0x10] sm:$0xff]
        %v531 = vld [vmem:[%s528 + $0x20] sm:$0xff]
        %v532 = vld [vmem:[%s528 + $0x30] sm:$0xff]
        %v533 = vstv %s527
        %v534 = vmul.f32 %v529, %v533
        %v535 = vmul.f32 %v530, %v533
        %v536 = vmul.f32 %v531, %v533
        %v537 = vmul.f32 %v532, %v533
        %v538 = vadd.f32 %v523, %v534
        %v539 = vadd.f32 %v524, %v535
        %v540 = vadd.f32 %v525, %v536
        %v541 = vadd.f32 %v526, %v537
        %s542 = sld [smem:[#allocation2 + $0x13]]
        %s543 = scalar_lea.vmem %s195, 96
        %v544 = vld [vmem:[%s543] sm:$0xff]
        %v545 = vld [vmem:[%s543 + $0x10] sm:$0xff]
        %v546 = vld [vmem:[%s543 + $0x20] sm:$0xff]
        %v547 = vld [vmem:[%s543 + $0x30] sm:$0xff]
        %v548 = vstv %s542
        %v549 = vmul.f32 %v544, %v548
        %v550 = vmul.f32 %v545, %v548
        %v551 = vmul.f32 %v546, %v548
        %v552 = vmul.f32 %v547, %v548
        %v553 = vadd.f32 %v538, %v549
        %v554 = vadd.f32 %v539, %v550
        %v555 = vadd.f32 %v540, %v551
        %v556 = vadd.f32 %v541, %v552
        %s557 = sld [smem:[#allocation2 + $0x14]]
        %v558 = vstv %s557
        %v559 = vmul.f32 %v529, %v558
        %v560 = vmul.f32 %v530, %v558
        %v561 = vmul.f32 %v531, %v558
        %v562 = vmul.f32 %v532, %v558
        %567 = vrot.lane.b32.xlu0 %v559, 127
        %v568 = vpop.permute.xlu0 %567
        %569 = vrot.lane.b32.xlu0 %v560, 127
        %v570 = vpop.permute.xlu0 %569
        %571 = vrot.lane.b32.xlu0 %v561, 127
        %v572 = vpop.permute.xlu0 %571
        %573 = vrot.lane.b32.xlu0 %v562, 127
        %v574 = vpop.permute.xlu0 %573
        %v579 = vadd.f32 %v553, %v568
        %v580 = vadd.f32 %v554, %v570
        %v581 = vadd.f32 %v555, %v572
        %v582 = vadd.f32 %v556, %v574
        %s583 = sld [smem:[#allocation2 + $0x15]]
        %s584 = scalar_lea.vmem %s195, 176
        %v585 = vld [vmem:[%s584] sm:$0xff]
        %v586 = vld [vmem:[%s584 + $0x10] sm:$0xff]
        %v587 = vld [vmem:[%s584 + $0x20] sm:$0xff]
        %v588 = vld [vmem:[%s584 + $0x30] sm:$0xff]
        %v589 = vstv %s583
        %v590 = vmul.f32 %v585, %v589
        %v591 = vmul.f32 %v586, %v589
        %v592 = vmul.f32 %v587, %v589
        %v593 = vmul.f32 %v588, %v589
        %v594 = vadd.f32 %v579, %v590
        %v595 = vadd.f32 %v580, %v591
        %v596 = vadd.f32 %v581, %v592
        %v597 = vadd.f32 %v582, %v593
        %s598 = sld [smem:[#allocation2 + $0x16]]
        %s599 = scalar_lea.vmem %s195, 256
        %v600 = vld [vmem:[%s599] sm:$0xff]
        %v601 = vld [vmem:[%s599 + $0x10] sm:$0xff]
        %v602 = vld [vmem:[%s599 + $0x20] sm:$0xff]
        %v603 = vld [vmem:[%s599 + $0x30] sm:$0xff]
        %v604 = vstv %s598
        %v605 = vmul.f32 %v600, %v604
        %v606 = vmul.f32 %v601, %v604
        %v607 = vmul.f32 %v602, %v604
        %v608 = vmul.f32 %v603, %v604
        %v609 = vadd.f32 %v594, %v605
        %v610 = vadd.f32 %v595, %v606
        %v611 = vadd.f32 %v596, %v607
        %v612 = vadd.f32 %v597, %v608
        %s613 = sld [smem:[#allocation2 + $0x17]]
        %v614 = vstv %s613
        %v615 = vmul.f32 %v585, %v614
        %v616 = vmul.f32 %v586, %v614
        %v617 = vmul.f32 %v587, %v614
        %v618 = vmul.f32 %v588, %v614
        %623 = vrot.lane.b32.xlu0 %v615, 127
        %v624 = vpop.permute.xlu0 %623
        %625 = vrot.lane.b32.xlu0 %v616, 127
        %v626 = vpop.permute.xlu0 %625
        %627 = vrot.lane.b32.xlu0 %v617, 127
        %v628 = vpop.permute.xlu0 %627
        %629 = vrot.lane.b32.xlu0 %v618, 127
        %v630 = vpop.permute.xlu0 %629
        %v635 = vadd.f32 %v609, %v624
        %v636 = vadd.f32 %v610, %v626
        %v637 = vadd.f32 %v611, %v628
        %v638 = vadd.f32 %v612, %v630
        %s639 = sld [smem:[#allocation2 + $0x18]]
        %v640 = vld [vmem:[%s528 + $0x1] sm:$0xff]
        %v641 = vld [vmem:[%s528 + $0x11] sm:$0xff]
        %v642 = vld [vmem:[%s528 + $0x21] sm:$0xff]
        %v643 = vld [vmem:[%s528 + $0x31] sm:$0xff]
        %v644 = vstv %s639
        %v645 = vmul.f32 %v640, %v644
        %v646 = vmul.f32 %v641, %v644
        %v647 = vmul.f32 %v642, %v644
        %v648 = vmul.f32 %v643, %v644
        %v649 = vadd.f32 %v635, %v645
        %v650 = vadd.f32 %v636, %v646
        %v651 = vadd.f32 %v637, %v647
        %v652 = vadd.f32 %v638, %v648
        %s653 = sld [smem:[#allocation2 + $0x19]]
        %v654 = vld [vmem:[%s543 + $0x1] sm:$0xff]
        %v655 = vld [vmem:[%s543 + $0x11] sm:$0xff]
        %v656 = vld [vmem:[%s543 + $0x21] sm:$0xff]
        %v657 = vld [vmem:[%s543 + $0x31] sm:$0xff]
        %v658 = vstv %s653
        %v659 = vmul.f32 %v654, %v658
        %v660 = vmul.f32 %v655, %v658
        %v661 = vmul.f32 %v656, %v658
        %v662 = vmul.f32 %v657, %v658
        %v663 = vadd.f32 %v649, %v659
        %v664 = vadd.f32 %v650, %v660
        %v665 = vadd.f32 %v651, %v661
        %v666 = vadd.f32 %v652, %v662
        %s667 = sld [smem:[#allocation2 + $0x1a]]
        %v668 = vstv %s667
        %v669 = vmul.f32 %v640, %v668
        %v670 = vmul.f32 %v641, %v668
        %v671 = vmul.f32 %v642, %v668
        %v672 = vmul.f32 %v643, %v668
        %677 = vrot.lane.b32.xlu0 %v669, 127
        %v678 = vpop.permute.xlu0 %677
        %679 = vrot.lane.b32.xlu0 %v670, 127
        %v680 = vpop.permute.xlu0 %679
        %681 = vrot.lane.b32.xlu0 %v671, 127
        %v682 = vpop.permute.xlu0 %681
        %683 = vrot.lane.b32.xlu0 %v672, 127
        %v684 = vpop.permute.xlu0 %683
        %v689 = vadd.f32 %v663, %v678
        %v690 = vadd.f32 %v664, %v680
        %v691 = vadd.f32 %v665, %v682
        %v692 = vadd.f32 %v666, %v684
        %s693 = sld [smem:[#allocation5]]
        %v694 = vstv %s693
        %v695 = vadd.f32 %v689, %v694
        %v696 = vadd.f32 %v690, %v694
        %v697 = vadd.f32 %v691, %v694
        %v698 = vadd.f32 %v692, %v694
        %v699 = vmax.f32 %v695, 0.0
        %v700 = vmax.f32 %v696, 0.0
        %v701 = vmax.f32 %v697, 0.0
        %v702 = vmax.f32 %v698, 0.0
        %vm703 = vcmask 64512
        %704 = vst.msk [vmem:[%s190] sm:$0xff] %vm703, %v699
        %705 = vst.msk [vmem:[%s190 + $0x8] sm:$0xff] %vm703, %v700
        %706 = vst.msk [vmem:[%s190 + $0x10] sm:$0xff] %vm703, %v701
        %707 = vst.msk [vmem:[%s190 + $0x18] sm:$0xff] %vm703, %v702
        %s708 = sld [smem:[#allocation2 + $0x1b]]
        %v709 = vld [vmem:[%s195] sm:$0xff]
        %v710 = vld [vmem:[%s195 + $0x10] sm:$0xff]
        %v711 = vld [vmem:[%s195 + $0x20] sm:$0xff]
        %v712 = vld [vmem:[%s195 + $0x30] sm:$0xff]
        %v713 = vstv %s708
        %v714 = vmul.f32 %v709, %v713
        %v715 = vmul.f32 %v710, %v713
        %v716 = vmul.f32 %v711, %v713
        %v717 = vmul.f32 %v712, %v713
        %v718 = vadd.f32 %v714, 0.0
        %v719 = vadd.f32 %v715, 0.0
        %v720 = vadd.f32 %v716, 0.0
        %v721 = vadd.f32 %v717, 0.0
        %s722 = sld [smem:[#allocation2 + $0x1c]]
        %v723 = vld [vmem:[%s211] sm:$0xff]
        %v724 = vld [vmem:[%s211 + $0x10] sm:$0xff]
        %v725 = vld [vmem:[%s211 + $0x20] sm:$0xff]
        %v726 = vld [vmem:[%s211 + $0x30] sm:$0xff]
        %v727 = vstv %s722
        %v728 = vmul.f32 %v723, %v727
        %v729 = vmul.f32 %v724, %v727
        %v730 = vmul.f32 %v725, %v727
        %v731 = vmul.f32 %v726, %v727
        %v732 = vadd.f32 %v718, %v728
        %v733 = vadd.f32 %v719, %v729
        %v734 = vadd.f32 %v720, %v730
        %v735 = vadd.f32 %v721, %v731
        %s736 = sld [smem:[#allocation2 + $0x1d]]
        %v737 = vstv %s736
        %v738 = vmul.f32 %v709, %v737
        %v739 = vmul.f32 %v710, %v737
        %v740 = vmul.f32 %v711, %v737
        %v741 = vmul.f32 %v712, %v737
        %746 = vrot.lane.b32.xlu0 %v738, 127
        %v747 = vpop.permute.xlu0 %746
        %748 = vrot.lane.b32.xlu0 %v739, 127
        %v749 = vpop.permute.xlu0 %748
        %750 = vrot.lane.b32.xlu0 %v740, 127
        %v751 = vpop.permute.xlu0 %750
        %752 = vrot.lane.b32.xlu0 %v741, 127
        %v753 = vpop.permute.xlu0 %752
        %v758 = vadd.f32 %v732, %v747
        %v759 = vadd.f32 %v733, %v749
        %v760 = vadd.f32 %v734, %v751
        %v761 = vadd.f32 %v735, %v753
        %s762 = sld [smem:[#allocation2 + $0x1e]]
        %v763 = vld [vmem:[%s252] sm:$0xff]
        %v764 = vld [vmem:[%s252 + $0x10] sm:$0xff]
        %v765 = vld [vmem:[%s252 + $0x20] sm:$0xff]
        %v766 = vld [vmem:[%s252 + $0x30] sm:$0xff]
        %v767 = vstv %s762
        %v768 = vmul.f32 %v763, %v767
        %v769 = vmul.f32 %v764, %v767
        %v770 = vmul.f32 %v765, %v767
        %v771 = vmul.f32 %v766, %v767
        %v772 = vadd.f32 %v758, %v768
        %v773 = vadd.f32 %v759, %v769
        %v774 = vadd.f32 %v760, %v770
        %v775 = vadd.f32 %v761, %v771
        %s776 = sld [smem:[#allocation2 + $0x1f]]
        %v777 = vld [vmem:[%s267] sm:$0xff]
        %v778 = vld [vmem:[%s267 + $0x10] sm:$0xff]
        %v779 = vld [vmem:[%s267 + $0x20] sm:$0xff]
        %v780 = vld [vmem:[%s267 + $0x30] sm:$0xff]
        %v781 = vstv %s776
        %v782 = vmul.f32 %v777, %v781
        %v783 = vmul.f32 %v778, %v781
        %v784 = vmul.f32 %v779, %v781
        %v785 = vmul.f32 %v780, %v781
        %v786 = vadd.f32 %v772, %v782
        %v787 = vadd.f32 %v773, %v783
        %v788 = vadd.f32 %v774, %v784
        %v789 = vadd.f32 %v775, %v785
        %s790 = sld [smem:[#allocation2 + $0x20]]
        %v791 = vstv %s790
        %v792 = vmul.f32 %v763, %v791
        %v793 = vmul.f32 %v764, %v791
        %v794 = vmul.f32 %v765, %v791
        %v795 = vmul.f32 %v766, %v791
        %800 = vrot.lane.b32.xlu0 %v792, 127
        %v801 = vpop.permute.xlu0 %800
        %802 = vrot.lane.b32.xlu0 %v793, 127
        %v803 = vpop.permute.xlu0 %802
        %804 = vrot.lane.b32.xlu0 %v794, 127
        %v805 = vpop.permute.xlu0 %804
        %806 = vrot.lane.b32.xlu0 %v795, 127
        %v807 = vpop.permute.xlu0 %806
        %v812 = vadd.f32 %v786, %v801
        %v813 = vadd.f32 %v787, %v803
        %v814 = vadd.f32 %v788, %v805
        %v815 = vadd.f32 %v789, %v807
        %s816 = sld [smem:[#allocation2 + $0x21]]
        %v817 = vld [vmem:[%s195 + $0x1] sm:$0xff]
        %v818 = vld [vmem:[%s195 + $0x11] sm:$0xff]
        %v819 = vld [vmem:[%s195 + $0x21] sm:$0xff]
        %v820 = vld [vmem:[%s195 + $0x31] sm:$0xff]
        %v821 = vstv %s816
        %v822 = vmul.f32 %v817, %v821
        %v823 = vmul.f32 %v818, %v821
        %v824 = vmul.f32 %v819, %v821
        %v825 = vmul.f32 %v820, %v821
        %v826 = vadd.f32 %v812, %v822
        %v827 = vadd.f32 %v813, %v823
        %v828 = vadd.f32 %v814, %v824
        %v829 = vadd.f32 %v815, %v825
        %s830 = sld [smem:[#allocation2 + $0x22]]
        %v831 = vld [vmem:[%s211 + $0x1] sm:$0xff]
        %v832 = vld [vmem:[%s211 + $0x11] sm:$0xff]
        %v833 = vld [vmem:[%s211 + $0x21] sm:$0xff]
        %v834 = vld [vmem:[%s211 + $0x31] sm:$0xff]
        %v835 = vstv %s830
        %v836 = vmul.f32 %v831, %v835
        %v837 = vmul.f32 %v832, %v835
        %v838 = vmul.f32 %v833, %v835
        %v839 = vmul.f32 %v834, %v835
        %v840 = vadd.f32 %v826, %v836
        %v841 = vadd.f32 %v827, %v837
        %v842 = vadd.f32 %v828, %v838
        %v843 = vadd.f32 %v829, %v839
        %s844 = sld [smem:[#allocation2 + $0x23]]
        %v845 = vstv %s844
        %v846 = vmul.f32 %v817, %v845
        %v847 = vmul.f32 %v818, %v845
        %v848 = vmul.f32 %v819, %v845
        %v849 = vmul.f32 %v820, %v845
        %854 = vrot.lane.b32.xlu0 %v846, 127
        %v855 = vpop.permute.xlu0 %854
        %856 = vrot.lane.b32.xlu0 %v847, 127
        %v857 = vpop.permute.xlu0 %856
        %858 = vrot.lane.b32.xlu0 %v848, 127
        %v859 = vpop.permute.xlu0 %858
        %860 = vrot.lane.b32.xlu0 %v849, 127
        %v861 = vpop.permute.xlu0 %860
        %v866 = vadd.f32 %v840, %v855
        %v867 = vadd.f32 %v841, %v857
        %v868 = vadd.f32 %v842, %v859
        %v869 = vadd.f32 %v843, %v861
        %s870 = sld [smem:[#allocation2 + $0x24]]
        %v871 = vld [vmem:[%s362] sm:$0xff]
        %v872 = vld [vmem:[%s362 + $0x10] sm:$0xff]
        %v873 = vld [vmem:[%s362 + $0x20] sm:$0xff]
        %v874 = vld [vmem:[%s362 + $0x30] sm:$0xff]
        %v875 = vstv %s870
        %v876 = vmul.f32 %v871, %v875
        %v877 = vmul.f32 %v872, %v875
        %v878 = vmul.f32 %v873, %v875
        %v879 = vmul.f32 %v874, %v875
        %v880 = vadd.f32 %v866, %v876
        %v881 = vadd.f32 %v867, %v877
        %v882 = vadd.f32 %v868, %v878
        %v883 = vadd.f32 %v869, %v879
        %s884 = sld [smem:[#allocation2 + $0x25]]
        %v885 = vld [vmem:[%s377] sm:$0xff]
        %v886 = vld [vmem:[%s377 + $0x10] sm:$0xff]
        %v887 = vld [vmem:[%s377 + $0x20] sm:$0xff]
        %v888 = vld [vmem:[%s377 + $0x30] sm:$0xff]
        %v889 = vstv %s884
        %v890 = vmul.f32 %v885, %v889
        %v891 = vmul.f32 %v886, %v889
        %v892 = vmul.f32 %v887, %v889
        %v893 = vmul.f32 %v888, %v889
        %v894 = vadd.f32 %v880, %v890
        %v895 = vadd.f32 %v881, %v891
        %v896 = vadd.f32 %v882, %v892
        %v897 = vadd.f32 %v883, %v893
        %s898 = sld [smem:[#allocation2 + $0x26]]
        %v899 = vstv %s898
        %v900 = vmul.f32 %v871, %v899
        %v901 = vmul.f32 %v872, %v899
        %v902 = vmul.f32 %v873, %v899
        %v903 = vmul.f32 %v874, %v899
        %908 = vrot.lane.b32.xlu0 %v900, 127
        %v909 = vpop.permute.xlu0 %908
        %910 = vrot.lane.b32.xlu0 %v901, 127
        %v911 = vpop.permute.xlu0 %910
        %912 = vrot.lane.b32.xlu0 %v902, 127
        %v913 = vpop.permute.xlu0 %912
        %914 = vrot.lane.b32.xlu0 %v903, 127
        %v915 = vpop.permute.xlu0 %914
        %v920 = vadd.f32 %v894, %v909
        %v921 = vadd.f32 %v895, %v911
        %v922 = vadd.f32 %v896, %v913
        %v923 = vadd.f32 %v897, %v915
        %s924 = sld [smem:[#allocation2 + $0x27]]
        %v925 = vld [vmem:[%s418] sm:$0xff]
        %v926 = vld [vmem:[%s418 + $0x10] sm:$0xff]
        %v927 = vld [vmem:[%s418 + $0x20] sm:$0xff]
        %v928 = vld [vmem:[%s418 + $0x30] sm:$0xff]
        %v929 = vstv %s924
        %v930 = vmul.f32 %v925, %v929
        %v931 = vmul.f32 %v926, %v929
        %v932 = vmul.f32 %v927, %v929
        %v933 = vmul.f32 %v928, %v929
        %v934 = vadd.f32 %v920, %v930
        %v935 = vadd.f32 %v921, %v931
        %v936 = vadd.f32 %v922, %v932
        %v937 = vadd.f32 %v923, %v933
        %s938 = sld [smem:[#allocation2 + $0x28]]
        %v939 = vld [vmem:[%s433] sm:$0xff]
        %v940 = vld [vmem:[%s433 + $0x10] sm:$0xff]
        %v941 = vld [vmem:[%s433 + $0x20] sm:$0xff]
        %v942 = vld [vmem:[%s433 + $0x30] sm:$0xff]
        %v943 = vstv %s938
        %v944 = vmul.f32 %v939, %v943
        %v945 = vmul.f32 %v940, %v943
        %v946 = vmul.f32 %v941, %v943
        %v947 = vmul.f32 %v942, %v943
        %v948 = vadd.f32 %v934, %v944
        %v949 = vadd.f32 %v935, %v945
        %v950 = vadd.f32 %v936, %v946
        %v951 = vadd.f32 %v937, %v947
        %s952 = sld [smem:[#allocation2 + $0x29]]
        %v953 = vstv %s952
        %v954 = vmul.f32 %v925, %v953
        %v955 = vmul.f32 %v926, %v953
        %v956 = vmul.f32 %v927, %v953
        %v957 = vmul.f32 %v928, %v953
        %962 = vrot.lane.b32.xlu0 %v954, 127
        %v963 = vpop.permute.xlu0 %962
        %964 = vrot.lane.b32.xlu0 %v955, 127
        %v965 = vpop.permute.xlu0 %964
        %966 = vrot.lane.b32.xlu0 %v956, 127
        %v967 = vpop.permute.xlu0 %966
        %968 = vrot.lane.b32.xlu0 %v957, 127
        %v969 = vpop.permute.xlu0 %968
        %v974 = vadd.f32 %v948, %v963
        %v975 = vadd.f32 %v949, %v965
        %v976 = vadd.f32 %v950, %v967
        %v977 = vadd.f32 %v951, %v969
        %s978 = sld [smem:[#allocation2 + $0x2a]]
        %v979 = vld [vmem:[%s362 + $0x1] sm:$0xff]
        %v980 = vld [vmem:[%s362 + $0x11] sm:$0xff]
        %v981 = vld [vmem:[%s362 + $0x21] sm:$0xff]
        %v982 = vld [vmem:[%s362 + $0x31] sm:$0xff]
        %v983 = vstv %s978
        %v984 = vmul.f32 %v979, %v983
        %v985 = vmul.f32 %v980, %v983
        %v986 = vmul.f32 %v981, %v983
        %v987 = vmul.f32 %v982, %v983
        %v988 = vadd.f32 %v974, %v984
        %v989 = vadd.f32 %v975, %v985
        %v990 = vadd.f32 %v976, %v986
        %v991 = vadd.f32 %v977, %v987
        %s992 = sld [smem:[#allocation2 + $0x2b]]
        %v993 = vld [vmem:[%s377 + $0x1] sm:$0xff]
        %v994 = vld [vmem:[%s377 + $0x11] sm:$0xff]
        %v995 = vld [vmem:[%s377 + $0x21] sm:$0xff]
        %v996 = vld [vmem:[%s377 + $0x31] sm:$0xff]
        %v997 = vstv %s992
        %v998 = vmul.f32 %v993, %v997
        %v999 = vmul.f32 %v994, %v997
        %v1000 = vmul.f32 %v995, %v997
        %v1001 = vmul.f32 %v996, %v997
        %v1002 = vadd.f32 %v988, %v998
        %v1003 = vadd.f32 %v989, %v999
        %v1004 = vadd.f32 %v990, %v1000
        %v1005 = vadd.f32 %v991, %v1001
        %s1006 = sld [smem:[#allocation2 + $0x2c]]
        %v1007 = vstv %s1006
        %v1008 = vmul.f32 %v979, %v1007
        %v1009 = vmul.f32 %v980, %v1007
        %v1010 = vmul.f32 %v981, %v1007
        %v1011 = vmul.f32 %v982, %v1007
        %1016 = vrot.lane.b32.xlu0 %v1008, 127
        %v1017 = vpop.permute.xlu0 %1016
        %1018 = vrot.lane.b32.xlu0 %v1009, 127
        %v1019 = vpop.permute.xlu0 %1018
        %1020 = vrot.lane.b32.xlu0 %v1010, 127
        %v1021 = vpop.permute.xlu0 %1020
        %1022 = vrot.lane.b32.xlu0 %v1011, 127
        %v1023 = vpop.permute.xlu0 %1022
        %v1028 = vadd.f32 %v1002, %v1017
        %v1029 = vadd.f32 %v1003, %v1019
        %v1030 = vadd.f32 %v1004, %v1021
        %v1031 = vadd.f32 %v1005, %v1023
        %s1032 = sld [smem:[#allocation2 + $0x2d]]
        %v1033 = vld [vmem:[%s528] sm:$0xff]
        %v1034 = vld [vmem:[%s528 + $0x10] sm:$0xff]
        %v1035 = vld [vmem:[%s528 + $0x20] sm:$0xff]
        %v1036 = vld [vmem:[%s528 + $0x30] sm:$0xff]
        %v1037 = vstv %s1032
        %v1038 = vmul.f32 %v1033, %v1037
        %v1039 = vmul.f32 %v1034, %v1037
        %v1040 = vmul.f32 %v1035, %v1037
        %v1041 = vmul.f32 %v1036, %v1037
        %v1042 = vadd.f32 %v1028, %v1038
        %v1043 = vadd.f32 %v1029, %v1039
        %v1044 = vadd.f32 %v1030, %v1040
        %v1045 = vadd.f32 %v1031, %v1041
        %s1046 = sld [smem:[#allocation2 + $0x2e]]
        %v1047 = vld [vmem:[%s543] sm:$0xff]
        %v1048 = vld [vmem:[%s543 + $0x10] sm:$0xff]
        %v1049 = vld [vmem:[%s543 + $0x20] sm:$0xff]
        %v1050 = vld [vmem:[%s543 + $0x30] sm:$0xff]
        %v1051 = vstv %s1046
        %v1052 = vmul.f32 %v1047, %v1051
        %v1053 = vmul.f32 %v1048, %v1051
        %v1054 = vmul.f32 %v1049, %v1051
        %v1055 = vmul.f32 %v1050, %v1051
        %v1056 = vadd.f32 %v1042, %v1052
        %v1057 = vadd.f32 %v1043, %v1053
        %v1058 = vadd.f32 %v1044, %v1054
        %v1059 = vadd.f32 %v1045, %v1055
        %s1060 = sld [smem:[#allocation2 + $0x2f]]
        %v1061 = vstv %s1060
        %v1062 = vmul.f32 %v1033, %v1061
        %v1063 = vmul.f32 %v1034, %v1061
        %v1064 = vmul.f32 %v1035, %v1061
        %v1065 = vmul.f32 %v1036, %v1061
        %1070 = vrot.lane.b32.xlu0 %v1062, 127
        %v1071 = vpop.permute.xlu0 %1070
        %1072 = vrot.lane.b32.xlu0 %v1063, 127
        %v1073 = vpop.permute.xlu0 %1072
        %1074 = vrot.lane.b32.xlu0 %v1064, 127
        %v1075 = vpop.permute.xlu0 %1074
        %1076 = vrot.lane.b32.xlu0 %v1065, 127
        %v1077 = vpop.permute.xlu0 %1076
        %v1082 = vadd.f32 %v1056, %v1071
        %v1083 = vadd.f32 %v1057, %v1073
        %v1084 = vadd.f32 %v1058, %v1075
        %v1085 = vadd.f32 %v1059, %v1077
        %s1086 = sld [smem:[#allocation2 + $0x30]]
        %v1087 = vld [vmem:[%s584] sm:$0xff]
        %v1088 = vld [vmem:[%s584 + $0x10] sm:$0xff]
        %v1089 = vld [vmem:[%s584 + $0x20] sm:$0xff]
        %v1090 = vld [vmem:[%s584 + $0x30] sm:$0xff]
        %v1091 = vstv %s1086
        %v1092 = vmul.f32 %v1087, %v1091
        %v1093 = vmul.f32 %v1088, %v1091
        %v1094 = vmul.f32 %v1089, %v1091
        %v1095 = vmul.f32 %v1090, %v1091
        %v1096 = vadd.f32 %v1082, %v1092
        %v1097 = vadd.f32 %v1083, %v1093
        %v1098 = vadd.f32 %v1084, %v1094
        %v1099 = vadd.f32 %v1085, %v1095
        %s1100 = sld [smem:[#allocation2 + $0x31]]
        %v1101 = vld [vmem:[%s599] sm:$0xff]
        %v1102 = vld [vmem:[%s599 + $0x10] sm:$0xff]
        %v1103 = vld [vmem:[%s599 + $0x20] sm:$0xff]
        %v1104 = vld [vmem:[%s599 + $0x30] sm:$0xff]
        %v1105 = vstv %s1100
        %v1106 = vmul.f32 %v1101, %v1105
        %v1107 = vmul.f32 %v1102, %v1105
        %v1108 = vmul.f32 %v1103, %v1105
        %v1109 = vmul.f32 %v1104, %v1105
        %v1110 = vadd.f32 %v1096, %v1106
        %v1111 = vadd.f32 %v1097, %v1107
        %v1112 = vadd.f32 %v1098, %v1108
        %v1113 = vadd.f32 %v1099, %v1109
        %s1114 = sld [smem:[#allocation2 + $0x32]]
        %v1115 = vstv %s1114
        %v1116 = vmul.f32 %v1087, %v1115
        %v1117 = vmul.f32 %v1088, %v1115
        %v1118 = vmul.f32 %v1089, %v1115
        %v1119 = vmul.f32 %v1090, %v1115
        %1124 = vrot.lane.b32.xlu0 %v1116, 127
        %v1125 = vpop.permute.xlu0 %1124
        %1126 = vrot.lane.b32.xlu0 %v1117, 127
        %v1127 = vpop.permute.xlu0 %1126
        %1128 = vrot.lane.b32.xlu0 %v1118, 127
        %v1129 = vpop.permute.xlu0 %1128
        %1130 = vrot.lane.b32.xlu0 %v1119, 127
        %v1131 = vpop.permute.xlu0 %1130
        %v1136 = vadd.f32 %v1110, %v1125
        %v1137 = vadd.f32 %v1111, %v1127
        %v1138 = vadd.f32 %v1112, %v1129
        %v1139 = vadd.f32 %v1113, %v1131
        %s1140 = sld [smem:[#allocation2 + $0x33]]
        %v1141 = vld [vmem:[%s528 + $0x1] sm:$0xff]
        %v1142 = vld [vmem:[%s528 + $0x11] sm:$0xff]
        %v1143 = vld [vmem:[%s528 + $0x21] sm:$0xff]
        %v1144 = vld [vmem:[%s528 + $0x31] sm:$0xff]
        %v1145 = vstv %s1140
        %v1146 = vmul.f32 %v1141, %v1145
        %v1147 = vmul.f32 %v1142, %v1145
        %v1148 = vmul.f32 %v1143, %v1145
        %v1149 = vmul.f32 %v1144, %v1145
        %v1150 = vadd.f32 %v1136, %v1146
        %v1151 = vadd.f32 %v1137, %v1147
        %v1152 = vadd.f32 %v1138, %v1148
        %v1153 = vadd.f32 %v1139, %v1149
        %s1154 = sld [smem:[#allocation2 + $0x34]]
        %v1155 = vld [vmem:[%s543 + $0x1] sm:$0xff]
        %v1156 = vld [vmem:[%s543 + $0x11] sm:$0xff]
        %v1157 = vld [vmem:[%s543 + $0x21] sm:$0xff]
        %v1158 = vld [vmem:[%s543 + $0x31] sm:$0xff]
        %v1159 = vstv %s1154
        %v1160 = vmul.f32 %v1155, %v1159
        %v1161 = vmul.f32 %v1156, %v1159
        %v1162 = vmul.f32 %v1157, %v1159
        %v1163 = vmul.f32 %v1158, %v1159
        %v1164 = vadd.f32 %v1150, %v1160
        %v1165 = vadd.f32 %v1151, %v1161
        %v1166 = vadd.f32 %v1152, %v1162
        %v1167 = vadd.f32 %v1153, %v1163
        %s1168 = sld [smem:[#allocation2 + $0x35]]
        %v1169 = vstv %s1168
        %v1170 = vmul.f32 %v1141, %v1169
        %v1171 = vmul.f32 %v1142, %v1169
        %v1172 = vmul.f32 %v1143, %v1169
        %v1173 = vmul.f32 %v1144, %v1169
        %1178 = vrot.lane.b32.xlu0 %v1170, 127
        %v1179 = vpop.permute.xlu0 %1178
        %1180 = vrot.lane.b32.xlu0 %v1171, 127
        %v1181 = vpop.permute.xlu0 %1180
        %1182 = vrot.lane.b32.xlu0 %v1172, 127
        %v1183 = vpop.permute.xlu0 %1182
        %1184 = vrot.lane.b32.xlu0 %v1173, 127
        %v1185 = vpop.permute.xlu0 %1184
        %v1190 = vadd.f32 %v1164, %v1179
        %v1191 = vadd.f32 %v1165, %v1181
        %v1192 = vadd.f32 %v1166, %v1183
        %v1193 = vadd.f32 %v1167, %v1185
        %s1194 = sld [smem:[#allocation5 + $0x1]]
        %v1195 = vstv %s1194
        %v1196 = vadd.f32 %v1190, %v1195
        %v1197 = vadd.f32 %v1191, %v1195
        %v1198 = vadd.f32 %v1192, %v1195
        %v1199 = vadd.f32 %v1193, %v1195
        %v1200 = vmax.f32 %v1196, 0.0
        %v1201 = vmax.f32 %v1197, 0.0
        %v1202 = vmax.f32 %v1198, 0.0
        %v1203 = vmax.f32 %v1199, 0.0
        %s1204 = scalar_lea.vmem %s190, 32 [#allocation7]
        %1205 = vst.msk [vmem:[%s1204] sm:$0xff] %vm703, %v1200
        %1206 = vst.msk [vmem:[%s1204 + $0x8] sm:$0xff] %vm703, %v1201
        %1207 = vst.msk [vmem:[%s1204 + $0x10] sm:$0xff] %vm703, %v1202
        %1208 = vst.msk [vmem:[%s1204 + $0x18] sm:$0xff] %vm703, %v1203
        %s1209 = sand.u32 %s95, 1
        %s1210 = scalar_lea.sflag [#allocation3], %s1209
        %s1211 = sand.u32 %s95, 1
        %s1212 = smul.addr %s1211, 64
        %s1213 = scalar_lea.vmem [#allocation7], %s1212
        // Predicated region
        $region41: #{tpu_custom_call.1} parent=31 // pred_check
          %p1214 = pneg %p105
        $region42: #{tpu_custom_call.1} parent=31 // pred_check_branch
          %1216 = sbr.rel (%p1214) target = $region44
        $region43: #{tpu_custom_call.1} parent=31 // pred_region
          %s1218 = ssub.s32 1024, 1024
          %1219 = vsyncadd %s1210, %s1218
          %s1220 = smul.addr %s19, 8
          %s1221 = smul.addr %s1220, 128
          %s1222 = scalar_lea.hbm %s3, %s1221
          %s1223 = sshll.u32 %s1213, 4
          %s1224 = int_to_ptr.vmem [resolvable:$true] %s1223
          %1229 = dma.vmem_to_hbm [thread:$0]  %s1224, 1024, %s1222, %s1210, 128, 128, 8
        $region44: #{tpu_custom_call.1} parent=31 // pred_fallthru
          _
      $region32: #{tpu_custom_call.1} parent=5 // pred_fallthru
        _
      %p1230 = scmp.le.s32.totalorder 2, %s14
      // Predicated region
      $region45: #{tpu_custom_call.1} parent=5 // pred_check
        %p1231 = pneg %p1230
      $region46: #{tpu_custom_call.1} parent=5 // pred_check_branch
        %1233 = sbr.rel (%p1231) target = $region48
      $region47: #{tpu_custom_call.1} parent=5 // pred_region
        %s1234 = ssub.s32 %s14, 2
        // Predicated region
        $region49: #{tpu_custom_call.1} parent=47 // pred_check
          %p1235 = pneg %p111
        $region50: #{tpu_custom_call.1} parent=47 // pred_check_branch
          %1237 = sbr.rel (%p1235) target = $region52
        $region51: #{tpu_custom_call.1} parent=47 // pred_region
          %s1238 = sand.u32 %s96, 1
          %s1239 = scalar_lea.sflag [#allocation3], %s1238
          %s1240 = sand.u32 %s96, 1
          %s1241 = smul.addr %s1240, 64
          %s1242 = scalar_lea.vmem [#allocation7], %s1241
          %1243 = dma.done %s1239, 1024
        $region52: #{tpu_custom_call.1} parent=47 // pred_fallthru
          _
      $region48: #{tpu_custom_call.1} parent=5 // pred_fallthru
        _
    $region6: #{tpu_custom_call.1} parent=1 // loop_footer
      %s18 = sadd.s32 1, %s14
    $region7: #{tpu_custom_call.1} parent=1 // loop_footer_branch
      %13 = sbr.rel target = $region3
    $region8: #{tpu_custom_call.1} parent=1 // loop_exit
      _
    %1244 = vsyncpa [#allocation3], 1
    %s1245 = scalar_lea.sflag [#allocation3], 1
    %1246 = vsyncpa %s1245, 1
    %1247 = vsyncpa [#allocation4], 1
    %s1248 = scalar_lea.sflag [#allocation4], 1
    %1249 = vsyncpa %s1248, 1
    %1250 = vsyncpa [#allocation6], 1

</llo_original>
